<compile_context>
chip_gen: v5e
topology: v5e:2x2
jax: 0.10.0
libtpu: 0.0.40
codegen_flags: <defaults>
</compile_context>

<pallas_src>
import functools

import jax
import jax.numpy as jnp
from jax.experimental import pallas as pl
from jax.experimental.pallas import tpu as pltpu


# ----------------------------------------------------------------------------
# Pallas kernel 1: transposed GEMM + bias + ReLU  (conv3x3/s2 via tap-GEMM)
# ----------------------------------------------------------------------------
def _conv_gemm_kernel(x_ref, w_ref, b_ref, o_ref):
    # x_ref: (1, K, tm) bf16   w_ref: (Cout, K) bf16   b_ref: (Cout, 1) f32
    # o_ref: (1, Cout, tm) bf16   -- tm is the lane-dense spatial tile.
    acc = jnp.dot(w_ref[...], x_ref[0], preferred_element_type=jnp.float32)
    acc = acc + b_ref[...]
    o_ref[0] = jnp.maximum(acc, 0.0).astype(o_ref.dtype)


def _choose_m_tile(M):
    # Largest 128-multiple spatial tile that divides M (fall back to full M
    # for tiny / unaligned toy shapes).
    if M % 128 != 0:
        return M
    for tm in (2048, 1024, 512, 256, 128):
        if M % tm == 0:
            return tm
    return M


def conv_gemm_bias_relu(cols_t, w_m, bias):
    """cols_t: (B, K, M) bf16, w_m: (Cout, K) bf16, bias: (Cout, 1) f32
    -> relu(w_m @ cols_t[b] + bias), shape (B, Cout, M), bf16."""
    B, K, M = cols_t.shape
    Cout = w_m.shape[0]
    tm = _choose_m_tile(M)
    out_dtype = jnp.bfloat16
    flops = 2 * B * M * K * Cout
    bytes_accessed = (cols_t.size * cols_t.dtype.itemsize
                      + w_m.size * w_m.dtype.itemsize
                      + bias.size * bias.dtype.itemsize
                      + B * Cout * M * jnp.dtype(out_dtype).itemsize)
    return pl.pallas_call(
        _conv_gemm_kernel,
        out_shape=jax.ShapeDtypeStruct((B, Cout, M), out_dtype),
        grid=(B, M // tm),
        in_specs=[
            pl.BlockSpec((1, K, tm), lambda b, m: (b, 0, m)),
            pl.BlockSpec((Cout, K), lambda b, m: (0, 0)),
            pl.BlockSpec((Cout, 1), lambda b, m: (0, 0)),
        ],
        out_specs=pl.BlockSpec((1, Cout, tm), lambda b, m: (b, 0, m)),
        compiler_params=pltpu.CompilerParams(
            dimension_semantics=("parallel", "parallel")),
        cost_estimate=pl.CostEstimate(flops=int(flops), transcendentals=0,
                                      bytes_accessed=int(bytes_accessed)),
    )(cols_t, w_m, bias)


def conv3x3_s2_relu(x, w, b):
    """3x3 conv, stride 2, pad 1, ReLU.  x: (B,Cin,H,W), w: (Cout,Cin,3,3)."""
    B, C, H, W = x.shape
    Cout = w.shape[0]
    Ho = (H + 2 - 3) // 2 + 1
    Wo = (W + 2 - 3) // 2 + 1
    xp = jnp.pad(x.astype(jnp.bfloat16), ((0, 0), (0, 0), (1, 1), (1, 1)))
    # Stride-2 taps: 9 quarter-resolution strided slices (~2.25x input, bf16),
    # stacked tap-minor so the reshape into (B, K, Ho*Wo) is contiguous and the
    # spatial axis stays the lane dim (no HBM transpose pass).
    taps = [xp[:, :, i:i + 2 * Ho:2, j:j + 2 * Wo:2]
            for i in range(3) for j in range(3)]
    cols_t = jnp.stack(taps, axis=2).reshape(B, C * 9, Ho * Wo)
    w_m = w.reshape(Cout, C * 9).astype(jnp.bfloat16)
    bias = b.reshape(Cout, 1).astype(jnp.float32)
    out = conv_gemm_bias_relu(cols_t, w_m, bias)          # (B, Cout, Ho*Wo)
    return out.reshape(B, Cout, Ho, Wo)


# ----------------------------------------------------------------------------
# Pallas kernel 2: correlation cost volume + online soft-argmin disparity
# ----------------------------------------------------------------------------
def _costvol_softargmin_kernel(lf_ref, rfp_ref, o_ref, *, num_disp):
    # lf_ref : (1, C, th, W)       left feature tile (bf16 or f32 in HBM)
    # rfp_ref: (1, C, th, W + D)   right feature tile, zero-padded on the left
    # o_ref  : (1, th, W)          soft-argmin disparity (f32)
    lf = lf_ref[0].astype(jnp.float32)      # upcast once after load (VPU math in f32)
    rf = rfp_ref[0].astype(jnp.float32)
    C, th, W = lf.shape
    inv_c = 1.0 / C
    neg_big = -1.0e30
    m = jnp.full((th, W), neg_big, dtype=jnp.float32)   # running max
    l = jnp.zeros((th, W), dtype=jnp.float32)           # running softmax denom
    num = jnp.zeros((th, W), dtype=jnp.float32)         # running sum p * d
    # Online (flash-style) soft-argmin over disparities: nothing of size
    # (D, th, W) is ever materialized.  num_disp is small & static here, so a
    # static unroll with static lane slices is used.
    # TODO(synk): for large D (>=64) switch to lax.fori_loop + incremental
    # pltpu.roll of the right-feature tile instead of per-d lane slices.
    for d in range(num_disp):
        shifted = rf[:, :, num_disp - d: num_disp - d + W]   # right shifted by d
        cost = jnp.sum(lf * shifted, axis=0) * inv_c          # (th, W)
        m_new = jnp.maximum(m, cost)
        alpha = jnp.exp(m - m_new)
        p = jnp.exp(cost - m_new)
        l = l * alpha + p
        num = num * alpha + p * float(d)
        m = m_new
    o_ref[0] = (num * pl.reciprocal(l, approx=True)).astype(o_ref.dtype)


def _choose_h_tile(C, H, W, num_disp, itemsize, budget_bytes=8 * 1024 * 1024):
    # th must divide H and be a multiple of 8 (or equal H) to satisfy the
    # (8, 128) block constraint.  Pick the largest tile whose double-buffered
    # inputs plus in-kernel f32 working set fit a conservative VMEM budget
    # (re-derived per call, so it also respects v7x's smaller VMEM).
    cands = [H] + [t for t in range(8, H, 8) if H % t == 0]

    def tile_bytes(t):
        in_bytes = C * t * (2 * W + num_disp) * itemsize
        f32_work = C * t * (2 * W + num_disp) * 4 + 6 * t * W * 4
        return 2 * in_bytes + f32_work

    fitting = [t for t in cands if tile_bytes(t) <= budget_bytes]
    return max(fitting) if fitting else min(cands)


def cost_volume_soft_argmin(lf, rf, num_disp):
    """lf, rf: (B, C, H, W) -> disparity map (B, H, W) float32."""
    B, C, H, W = lf.shape
    # Left zero-pad so each disparity is a static in-kernel lane slice; the
    # padded region contributes cost 0 (matches the reference left-border
    # behaviour of the original implementation).
    rfp = jnp.pad(rf, ((0, 0), (0, 0), (0, 0), (num_disp, 0)))
    th = _choose_h_tile(C, H, W, num_disp, jnp.dtype(lf.dtype).itemsize)
    kern = functools.partial(_costvol_softargmin_kernel, num_disp=num_disp)
    flops = B * H * W * num_disp * (2 * C + 8)
    bytes_accessed = (lf.size * lf.dtype.itemsize
                      + rfp.size * rfp.dtype.itemsize + B * H * W * 4)
    return pl.pallas_call(
        kern,
        out_shape=jax.ShapeDtypeStruct((B, H, W), jnp.float32),
        grid=(B, H // th),
        in_specs=[
            pl.BlockSpec((1, C, th, W), lambda b, t: (b, 0, t, 0)),
            pl.BlockSpec((1, C, th, W + num_disp), lambda b, t: (b, 0, t, 0)),
        ],
        out_specs=pl.BlockSpec((1, th, W), lambda b, t: (b, t, 0)),
        compiler_params=pltpu.CompilerParams(
            dimension_semantics=("parallel", "parallel")),
        cost_estimate=pl.CostEstimate(
            flops=int(flops),
            transcendentals=int(2 * B * H * W * num_disp),
            bytes_accessed=int(bytes_accessed)),
    )(lf, rfp)


# ----------------------------------------------------------------------------
# HDispNet
# ----------------------------------------------------------------------------
class HDispNetPallas:
    def __init__(self, max_disparity, key, in_ch=3, c1=8, c2=16):
        self.max_disparity = int(max_disparity)
        k1, k2, k3, k4 = jax.random.split(key, 4)
        # FeaturePyramid parameters (shared between left/right images).
        # Weights are stored in bf16 (bf16 MXU + halved HBM traffic); biases
        # stay f32 and are added to the f32 accumulator inside the kernel.
        self.w1 = (0.1 * jax.random.normal(k1, (c1, in_ch, 3, 3), jnp.float32)
                   ).astype(jnp.bfloat16)
        self.b1 = 0.01 * jax.random.normal(k2, (c1,), jnp.float32)
        self.w2 = (0.1 * jax.random.normal(k3, (c2, c1, 3, 3), jnp.float32)
                   ).astype(jnp.bfloat16)
        self.b2 = 0.01 * jax.random.normal(k4, (c2,), jnp.float32)

    def feature_pyramid(self, img):
        f1 = conv3x3_s2_relu(img, self.w1, self.b1)   # 1/2 resolution, bf16
        f2 = conv3x3_s2_relu(f1, self.w2, self.b2)    # 1/4 resolution, bf16
        return f1, f2

    def __call__(self, img_left, img_right):
        lf1, lf2 = self.feature_pyramid(img_left)
        rf1, rf2 = self.feature_pyramid(img_right)
        # DispHead((img_left, *left_feats), (img_right, *right_feats)):
        # one correlation cost volume + soft-argmin per scale.  Raw images are
        # moved as bf16 too; correlation math runs in f32 inside the kernel.
        il = img_left.astype(jnp.bfloat16)
        ir = img_right.astype(jnp.bfloat16)
        d_full = cost_volume_soft_argmin(il, ir, self.max_disparity)
        d_half = cost_volume_soft_argmin(lf1, rf1, max(self.max_disparity // 2, 1))
        d_quarter = cost_volume_soft_argmin(lf2, rf2, max(self.max_disparity // 4, 1))
        return (d_full, d_half, d_quarter)


if __name__ == "__main__":
    key = jax.random.PRNGKey(0)
    k_params, k_left, k_right = jax.random.split(key, 3)

    B, C, H, W = 2, 3, 16, 16
    max_disparity = 8

    img_left = jax.random.uniform(k_left, (B, C, H, W), jnp.float32)
    img_right = jax.random.uniform(k_right, (B, C, H, W), jnp.float32)

    net = HDispNetPallas(max_disparity, k_params, in_ch=C)
    forward = jax.jit(lambda l, r: net(l, r))
    disparity_scales = jax.block_until_ready(forward(img_left, img_right))

    assert disparity_scales[0].shape == (B, H, W)
    assert disparity_scales[1].shape == (B, H // 2, W // 2)
    assert disparity_scales[2].shape == (B, H // 4, W // 4)
    assert all(bool(jnp.all(jnp.isfinite(d))) for d in disparity_scales)
    print("KERNEL_OK")
</pallas_src>

<mosaic_0001>
module attributes {stable_mosaic.version = 11 : i64} {
  func.func @_costvol_softargmin_kernel(%arg0: i32, %arg1: i32, %arg2: memref<1x3x16x16xbf16, #tpu.memory_space<vmem>>, %arg3: memref<1x3x16x24xbf16, #tpu.memory_space<vmem>>, %arg4: memref<1x16x16xf32, #tpu.memory_space<vmem>>) attributes {dimension_semantics = [#tpu.dimension_semantics<parallel>, #tpu.dimension_semantics<parallel>], iteration_bounds = array<i64: 2, 1>, scalar_prefetch = 0 : i64, scratch_operands = 0 : i64, tpu.core_type = #tpu.core_type<tc>, window_params = [{transform_indices = @transform_0, window_bounds = array<i64: 1, 3, 16, 16>}, {transform_indices = @transform_1, window_bounds = array<i64: 1, 3, 16, 24>}, {transform_indices = @transform_2, window_bounds = array<i64: 1, 16, 16>}]} {
    %c0 = arith.constant 0 : index
    %c0_0 = arith.constant 0 : index
    %c0_1 = arith.constant 0 : index
    %c0_2 = arith.constant 0 : index
    %0 = vector.load %arg2[%c0, %c0_0, %c0_1, %c0_2] : memref<1x3x16x16xbf16, #tpu.memory_space<vmem>>, vector<1x3x16x16xbf16>
    %1 = vector.shape_cast %0 : vector<1x3x16x16xbf16> to vector<3x16x16xbf16>
    %2 = arith.extf %1 : vector<3x16x16xbf16> to vector<3x16x16xf32>
    %c0_3 = arith.constant 0 : index
    %c0_4 = arith.constant 0 : index
    %c0_5 = arith.constant 0 : index
    %c0_6 = arith.constant 0 : index
    %3 = vector.load %arg3[%c0_3, %c0_4, %c0_5, %c0_6] : memref<1x3x16x24xbf16, #tpu.memory_space<vmem>>, vector<1x3x16x24xbf16>
    %4 = vector.shape_cast %3 : vector<1x3x16x24xbf16> to vector<3x16x24xbf16>
    %5 = arith.extf %4 : vector<3x16x24xbf16> to vector<3x16x24xf32>
    %cst = arith.constant -1.000000e+30 : f32
    %6 = vector.broadcast %cst : f32 to vector<16x16xf32>
    %cst_7 = arith.constant 0.000000e+00 : f32
    %7 = vector.broadcast %cst_7 : f32 to vector<16x16xf32>
    %cst_8 = arith.constant 0.000000e+00 : f32
    %8 = vector.broadcast %cst_8 : f32 to vector<16x16xf32>
    %9 = vector.extract_strided_slice %5 {offsets = [0, 0, 8], sizes = [3, 16, 16], strides = [1, 1, 1]} : vector<3x16x24xf32> to vector<3x16x16xf32>
    %10 = arith.mulf %2, %9 : vector<3x16x16xf32>
    %cst_9 = arith.constant dense<0.000000e+00> : vector<16x16xf32>
    %11 = vector.multi_reduction <add>, %10, %cst_9 [0] : vector<3x16x16xf32> to vector<16x16xf32>
    %cst_10 = arith.constant 0.333333343 : f32
    %12 = vector.broadcast %cst_10 : f32 to vector<16x16xf32>
    %13 = arith.mulf %11, %12 : vector<16x16xf32>
    %14 = arith.maximumf %6, %13 : vector<16x16xf32>
    %15 = arith.subf %6, %14 : vector<16x16xf32>
    %16 = math.exp %15 : vector<16x16xf32>
    %17 = arith.subf %13, %14 : vector<16x16xf32>
    %18 = math.exp %17 : vector<16x16xf32>
    %19 = arith.mulf %7, %16 : vector<16x16xf32>
    %20 = arith.addf %19, %18 : vector<16x16xf32>
    %21 = arith.mulf %8, %16 : vector<16x16xf32>
    %cst_11 = arith.constant 0.000000e+00 : f32
    %22 = vector.broadcast %cst_11 : f32 to vector<16x16xf32>
    %23 = arith.mulf %18, %22 : vector<16x16xf32>
    %24 = arith.addf %21, %23 : vector<16x16xf32>
    %25 = vector.extract_strided_slice %5 {offsets = [0, 0, 7], sizes = [3, 16, 16], strides = [1, 1, 1]} : vector<3x16x24xf32> to vector<3x16x16xf32>
    %26 = arith.mulf %2, %25 : vector<3x16x16xf32>
    %cst_12 = arith.constant dense<0.000000e+00> : vector<16x16xf32>
    %27 = vector.multi_reduction <add>, %26, %cst_12 [0] : vector<3x16x16xf32> to vector<16x16xf32>
    %cst_13 = arith.constant 0.333333343 : f32
    %28 = vector.broadcast %cst_13 : f32 to vector<16x16xf32>
    %29 = arith.mulf %27, %28 : vector<16x16xf32>
    %30 = arith.maximumf %14, %29 : vector<16x16xf32>
    %31 = arith.subf %14, %30 : vector<16x16xf32>
    %32 = math.exp %31 : vector<16x16xf32>
    %33 = arith.subf %29, %30 : vector<16x16xf32>
    %34 = math.exp %33 : vector<16x16xf32>
    %35 = arith.mulf %20, %32 : vector<16x16xf32>
    %36 = arith.addf %35, %34 : vector<16x16xf32>
    %37 = arith.mulf %24, %32 : vector<16x16xf32>
    %cst_14 = arith.constant 1.000000e+00 : f32
    %38 = vector.broadcast %cst_14 : f32 to vector<16x16xf32>
    %39 = arith.mulf %34, %38 : vector<16x16xf32>
    %40 = arith.addf %37, %39 : vector<16x16xf32>
    %41 = vector.extract_strided_slice %5 {offsets = [0, 0, 6], sizes = [3, 16, 16], strides = [1, 1, 1]} : vector<3x16x24xf32> to vector<3x16x16xf32>
    %42 = arith.mulf %2, %41 : vector<3x16x16xf32>
    %cst_15 = arith.constant dense<0.000000e+00> : vector<16x16xf32>
    %43 = vector.multi_reduction <add>, %42, %cst_15 [0] : vector<3x16x16xf32> to vector<16x16xf32>
    %cst_16 = arith.constant 0.333333343 : f32
    %44 = vector.broadcast %cst_16 : f32 to vector<16x16xf32>
    %45 = arith.mulf %43, %44 : vector<16x16xf32>
    %46 = arith.maximumf %30, %45 : vector<16x16xf32>
    %47 = arith.subf %30, %46 : vector<16x16xf32>
    %48 = math.exp %47 : vector<16x16xf32>
    %49 = arith.subf %45, %46 : vector<16x16xf32>
    %50 = math.exp %49 : vector<16x16xf32>
    %51 = arith.mulf %36, %48 : vector<16x16xf32>
    %52 = arith.addf %51, %50 : vector<16x16xf32>
    %53 = arith.mulf %40, %48 : vector<16x16xf32>
    %cst_17 = arith.constant 2.000000e+00 : f32
    %54 = vector.broadcast %cst_17 : f32 to vector<16x16xf32>
    %55 = arith.mulf %50, %54 : vector<16x16xf32>
    %56 = arith.addf %53, %55 : vector<16x16xf32>
    %57 = vector.extract_strided_slice %5 {offsets = [0, 0, 5], sizes = [3, 16, 16], strides = [1, 1, 1]} : vector<3x16x24xf32> to vector<3x16x16xf32>
    %58 = arith.mulf %2, %57 : vector<3x16x16xf32>
    %cst_18 = arith.constant dense<0.000000e+00> : vector<16x16xf32>
    %59 = vector.multi_reduction <add>, %58, %cst_18 [0] : vector<3x16x16xf32> to vector<16x16xf32>
    %cst_19 = arith.constant 0.333333343 : f32
    %60 = vector.broadcast %cst_19 : f32 to vector<16x16xf32>
    %61 = arith.mulf %59, %60 : vector<16x16xf32>
    %62 = arith.maximumf %46, %61 : vector<16x16xf32>
    %63 = arith.subf %46, %62 : vector<16x16xf32>
    %64 = math.exp %63 : vector<16x16xf32>
    %65 = arith.subf %61, %62 : vector<16x16xf32>
    %66 = math.exp %65 : vector<16x16xf32>
    %67 = arith.mulf %52, %64 : vector<16x16xf32>
    %68 = arith.addf %67, %66 : vector<16x16xf32>
    %69 = arith.mulf %56, %64 : vector<16x16xf32>
    %cst_20 = arith.constant 3.000000e+00 : f32
    %70 = vector.broadcast %cst_20 : f32 to vector<16x16xf32>
    %71 = arith.mulf %66, %70 : vector<16x16xf32>
    %72 = arith.addf %69, %71 : vector<16x16xf32>
    %73 = vector.extract_strided_slice %5 {offsets = [0, 0, 4], sizes = [3, 16, 16], strides = [1, 1, 1]} : vector<3x16x24xf32> to vector<3x16x16xf32>
    %74 = arith.mulf %2, %73 : vector<3x16x16xf32>
    %cst_21 = arith.constant dense<0.000000e+00> : vector<16x16xf32>
    %75 = vector.multi_reduction <add>, %74, %cst_21 [0] : vector<3x16x16xf32> to vector<16x16xf32>
    %cst_22 = arith.constant 0.333333343 : f32
    %76 = vector.broadcast %cst_22 : f32 to vector<16x16xf32>
    %77 = arith.mulf %75, %76 : vector<16x16xf32>
    %78 = arith.maximumf %62, %77 : vector<16x16xf32>
    %79 = arith.subf %62, %78 : vector<16x16xf32>
    %80 = math.exp %79 : vector<16x16xf32>
    %81 = arith.subf %77, %78 : vector<16x16xf32>
    %82 = math.exp %81 : vector<16x16xf32>
    %83 = arith.mulf %68, %80 : vector<16x16xf32>
    %84 = arith.addf %83, %82 : vector<16x16xf32>
    %85 = arith.mulf %72, %80 : vector<16x16xf32>
    %cst_23 = arith.constant 4.000000e+00 : f32
    %86 = vector.broadcast %cst_23 : f32 to vector<16x16xf32>
    %87 = arith.mulf %82, %86 : vector<16x16xf32>
    %88 = arith.addf %85, %87 : vector<16x16xf32>
    %89 = vector.extract_strided_slice %5 {offsets = [0, 0, 3], sizes = [3, 16, 16], strides = [1, 1, 1]} : vector<3x16x24xf32> to vector<3x16x16xf32>
    %90 = arith.mulf %2, %89 : vector<3x16x16xf32>
    %cst_24 = arith.constant dense<0.000000e+00> : vector<16x16xf32>
    %91 = vector.multi_reduction <add>, %90, %cst_24 [0] : vector<3x16x16xf32> to vector<16x16xf32>
    %cst_25 = arith.constant 0.333333343 : f32
    %92 = vector.broadcast %cst_25 : f32 to vector<16x16xf32>
    %93 = arith.mulf %91, %92 : vector<16x16xf32>
    %94 = arith.maximumf %78, %93 : vector<16x16xf32>
    %95 = arith.subf %78, %94 : vector<16x16xf32>
    %96 = math.exp %95 : vector<16x16xf32>
    %97 = arith.subf %93, %94 : vector<16x16xf32>
    %98 = math.exp %97 : vector<16x16xf32>
    %99 = arith.mulf %84, %96 : vector<16x16xf32>
    %100 = arith.addf %99, %98 : vector<16x16xf32>
    %101 = arith.mulf %88, %96 : vector<16x16xf32>
    %cst_26 = arith.constant 5.000000e+00 : f32
    %102 = vector.broadcast %cst_26 : f32 to vector<16x16xf32>
    %103 = arith.mulf %98, %102 : vector<16x16xf32>
    %104 = arith.addf %101, %103 : vector<16x16xf32>
    %105 = vector.extract_strided_slice %5 {offsets = [0, 0, 2], sizes = [3, 16, 16], strides = [1, 1, 1]} : vector<3x16x24xf32> to vector<3x16x16xf32>
    %106 = arith.mulf %2, %105 : vector<3x16x16xf32>
    %cst_27 = arith.constant dense<0.000000e+00> : vector<16x16xf32>
    %107 = vector.multi_reduction <add>, %106, %cst_27 [0] : vector<3x16x16xf32> to vector<16x16xf32>
    %cst_28 = arith.constant 0.333333343 : f32
    %108 = vector.broadcast %cst_28 : f32 to vector<16x16xf32>
    %109 = arith.mulf %107, %108 : vector<16x16xf32>
    %110 = arith.maximumf %94, %109 : vector<16x16xf32>
    %111 = arith.subf %94, %110 : vector<16x16xf32>
    %112 = math.exp %111 : vector<16x16xf32>
    %113 = arith.subf %109, %110 : vector<16x16xf32>
    %114 = math.exp %113 : vector<16x16xf32>
    %115 = arith.mulf %100, %112 : vector<16x16xf32>
    %116 = arith.addf %115, %114 : vector<16x16xf32>
    %117 = arith.mulf %104, %112 : vector<16x16xf32>
    %cst_29 = arith.constant 6.000000e+00 : f32
    %118 = vector.broadcast %cst_29 : f32 to vector<16x16xf32>
    %119 = arith.mulf %114, %118 : vector<16x16xf32>
    %120 = arith.addf %117, %119 : vector<16x16xf32>
    %121 = vector.extract_strided_slice %5 {offsets = [0, 0, 1], sizes = [3, 16, 16], strides = [1, 1, 1]} : vector<3x16x24xf32> to vector<3x16x16xf32>
    %122 = arith.mulf %2, %121 : vector<3x16x16xf32>
    %cst_30 = arith.constant dense<0.000000e+00> : vector<16x16xf32>
    %123 = vector.multi_reduction <add>, %122, %cst_30 [0] : vector<3x16x16xf32> to vector<16x16xf32>
    %cst_31 = arith.constant 0.333333343 : f32
    %124 = vector.broadcast %cst_31 : f32 to vector<16x16xf32>
    %125 = arith.mulf %123, %124 : vector<16x16xf32>
    %126 = arith.maximumf %110, %125 : vector<16x16xf32>
    %127 = arith.subf %110, %126 : vector<16x16xf32>
    %128 = math.exp %127 : vector<16x16xf32>
    %129 = arith.subf %125, %126 : vector<16x16xf32>
    %130 = math.exp %129 : vector<16x16xf32>
    %131 = arith.mulf %116, %128 : vector<16x16xf32>
    %132 = arith.addf %131, %130 : vector<16x16xf32>
    %133 = arith.mulf %120, %128 : vector<16x16xf32>
    %cst_32 = arith.constant 7.000000e+00 : f32
    %134 = vector.broadcast %cst_32 : f32 to vector<16x16xf32>
    %135 = arith.mulf %130, %134 : vector<16x16xf32>
    %136 = arith.addf %133, %135 : vector<16x16xf32>
    %137 = tpu.reciprocal %132 {approx = true} : vector<16x16xf32> -> vector<16x16xf32>
    %138 = arith.mulf %136, %137 : vector<16x16xf32>
    %c0_33 = arith.constant 0 : index
    %c0_34 = arith.constant 0 : index
    %c0_35 = arith.constant 0 : index
    %139 = vector.load %arg4[%c0_33, %c0_34, %c0_35] : memref<1x16x16xf32, #tpu.memory_space<vmem>>, vector<1x16x16xf32>
    %140 = vector.shape_cast %139 : vector<1x16x16xf32> to vector<16x16xf32>
    %141 = vector.shape_cast %138 : vector<16x16xf32> to vector<1x16x16xf32>
    tpu.vector_store %arg4[%c0_33, %c0_34, %c0_35], %141 {strides = array<i32>} : memref<1x16x16xf32, #tpu.memory_space<vmem>>, vector<1x16x16xf32>,
    return
  }
  func.func @transform_0(%arg0: i32, %arg1: i32) -> (i32, i32, i32, i32) {
    %c0_i32 = arith.constant 0 : i32
    %c0_i32_0 = arith.constant 0 : i32
    %c0_i32_1 = arith.constant 0 : i32
    return %arg0, %c0_i32, %arg1, %c0_i32_0 : i32, i32, i32, i32
  }
  func.func @transform_1(%arg0: i32, %arg1: i32) -> (i32, i32, i32, i32) {
    %c0_i32 = arith.constant 0 : i32
    %c0_i32_0 = arith.constant 0 : i32
    %c0_i32_1 = arith.constant 0 : i32
    return %arg0, %c0_i32, %arg1, %c0_i32_0 : i32, i32, i32, i32
  }
  func.func @transform_2(%arg0: i32, %arg1: i32) -> (i32, i32, i32) {
    %c0_i32 = arith.constant 0 : i32
    %c0_i32_0 = arith.constant 0 : i32
    return %arg0, %arg1, %c0_i32 : i32, i32, i32
  }
}

module attributes {stable_mosaic.version = 11 : i64} {
  func.func @_costvol_softargmin_kernel(%arg0: i32, %arg1: i32, %arg2: memref<1x8x8x8xbf16, #tpu.memory_space<vmem>>, %arg3: memref<1x8x8x12xbf16, #tpu.memory_space<vmem>>, %arg4: memref<1x8x8xf32, #tpu.memory_space<vmem>>) attributes {dimension_semantics = [#tpu.dimension_semantics<parallel>, #tpu.dimension_semantics<parallel>], iteration_bounds = array<i64: 2, 1>, scalar_prefetch = 0 : i64, scratch_operands = 0 : i64, tpu.core_type = #tpu.core_type<tc>, window_params = [{transform_indices = @transform_0, window_bounds = array<i64: 1, 8, 8, 8>}, {transform_indices = @transform_1, window_bounds = array<i64: 1, 8, 8, 12>}, {transform_indices = @transform_2, window_bounds = array<i64: 1, 8, 8>}]} {
    %c0 = arith.constant 0 : index
    %c0_0 = arith.constant 0 : index
    %c0_1 = arith.constant 0 : index
    %c0_2 = arith.constant 0 : index
    %0 = vector.load %arg2[%c0, %c0_0, %c0_1, %c0_2] : memref<1x8x8x8xbf16, #tpu.memory_space<vmem>>, vector<1x8x8x8xbf16>
    %1 = vector.shape_cast %0 : vector<1x8x8x8xbf16> to vector<8x8x8xbf16>
    %2 = arith.extf %1 : vector<8x8x8xbf16> to vector<8x8x8xf32>
    %c0_3 = arith.constant 0 : index
    %c0_4 = arith.constant 0 : index
    %c0_5 = arith.constant 0 : index
    %c0_6 = arith.constant 0 : index
    %3 = vector.load %arg3[%c0_3, %c0_4, %c0_5, %c0_6] : memref<1x8x8x12xbf16, #tpu.memory_space<vmem>>, vector<1x8x8x12xbf16>
    %4 = vector.shape_cast %3 : vector<1x8x8x12xbf16> to vector<8x8x12xbf16>
    %5 = arith.extf %4 : vector<8x8x12xbf16> to vector<8x8x12xf32>
    %cst = arith.constant -1.000000e+30 : f32
    %6 = vector.broadcast %cst : f32 to vector<8x8xf32>
    %cst_7 = arith.constant 0.000000e+00 : f32
    %7 = vector.broadcast %cst_7 : f32 to vector<8x8xf32>
    %cst_8 = arith.constant 0.000000e+00 : f32
    %8 = vector.broadcast %cst_8 : f32 to vector<8x8xf32>
    %9 = vector.extract_strided_slice %5 {offsets = [0, 0, 4], sizes = [8, 8, 8], strides = [1, 1, 1]} : vector<8x8x12xf32> to vector<8x8x8xf32>
    %10 = arith.mulf %2, %9 : vector<8x8x8xf32>
    %cst_9 = arith.constant dense<0.000000e+00> : vector<8x8xf32>
    %11 = vector.multi_reduction <add>, %10, %cst_9 [0] : vector<8x8x8xf32> to vector<8x8xf32>
    %cst_10 = arith.constant 1.250000e-01 : f32
    %12 = vector.broadcast %cst_10 : f32 to vector<8x8xf32>
    %13 = arith.mulf %11, %12 : vector<8x8xf32>
    %14 = arith.maximumf %6, %13 : vector<8x8xf32>
    %15 = arith.subf %6, %14 : vector<8x8xf32>
    %16 = math.exp %15 : vector<8x8xf32>
    %17 = arith.subf %13, %14 : vector<8x8xf32>
    %18 = math.exp %17 : vector<8x8xf32>
    %19 = arith.mulf %7, %16 : vector<8x8xf32>
    %20 = arith.addf %19, %18 : vector<8x8xf32>
    %21 = arith.mulf %8, %16 : vector<8x8xf32>
    %cst_11 = arith.constant 0.000000e+00 : f32
    %22 = vector.broadcast %cst_11 : f32 to vector<8x8xf32>
    %23 = arith.mulf %18, %22 : vector<8x8xf32>
    %24 = arith.addf %21, %23 : vector<8x8xf32>
    %25 = vector.extract_strided_slice %5 {offsets = [0, 0, 3], sizes = [8, 8, 8], strides = [1, 1, 1]} : vector<8x8x12xf32> to vector<8x8x8xf32>
    %26 = arith.mulf %2, %25 : vector<8x8x8xf32>
    %cst_12 = arith.constant dense<0.000000e+00> : vector<8x8xf32>
    %27 = vector.multi_reduction <add>, %26, %cst_12 [0] : vector<8x8x8xf32> to vector<8x8xf32>
    %cst_13 = arith.constant 1.250000e-01 : f32
    %28 = vector.broadcast %cst_13 : f32 to vector<8x8xf32>
    %29 = arith.mulf %27, %28 : vector<8x8xf32>
    %30 = arith.maximumf %14, %29 : vector<8x8xf32>
    %31 = arith.subf %14, %30 : vector<8x8xf32>
    %32 = math.exp %31 : vector<8x8xf32>
    %33 = arith.subf %29, %30 : vector<8x8xf32>
    %34 = math.exp %33 : vector<8x8xf32>
    %35 = arith.mulf %20, %32 : vector<8x8xf32>
    %36 = arith.addf %35, %34 : vector<8x8xf32>
    %37 = arith.mulf %24, %32 : vector<8x8xf32>
    %cst_14 = arith.constant 1.000000e+00 : f32
    %38 = vector.broadcast %cst_14 : f32 to vector<8x8xf32>
    %39 = arith.mulf %34, %38 : vector<8x8xf32>
    %40 = arith.addf %37, %39 : vector<8x8xf32>
    %41 = vector.extract_strided_slice %5 {offsets = [0, 0, 2], sizes = [8, 8, 8], strides = [1, 1, 1]} : vector<8x8x12xf32> to vector<8x8x8xf32>
    %42 = arith.mulf %2, %41 : vector<8x8x8xf32>
    %cst_15 = arith.constant dense<0.000000e+00> : vector<8x8xf32>
    %43 = vector.multi_reduction <add>, %42, %cst_15 [0] : vector<8x8x8xf32> to vector<8x8xf32>
    %cst_16 = arith.constant 1.250000e-01 : f32
    %44 = vector.broadcast %cst_16 : f32 to vector<8x8xf32>
    %45 = arith.mulf %43, %44 : vector<8x8xf32>
    %46 = arith.maximumf %30, %45 : vector<8x8xf32>
    %47 = arith.subf %30, %46 : vector<8x8xf32>
    %48 = math.exp %47 : vector<8x8xf32>
    %49 = arith.subf %45, %46 : vector<8x8xf32>
    %50 = math.exp %49 : vector<8x8xf32>
    %51 = arith.mulf %36, %48 : vector<8x8xf32>
    %52 = arith.addf %51, %50 : vector<8x8xf32>
    %53 = arith.mulf %40, %48 : vector<8x8xf32>
    %cst_17 = arith.constant 2.000000e+00 : f32
    %54 = vector.broadcast %cst_17 : f32 to vector<8x8xf32>
    %55 = arith.mulf %50, %54 : vector<8x8xf32>
    %56 = arith.addf %53, %55 : vector<8x8xf32>
    %57 = vector.extract_strided_slice %5 {offsets = [0, 0, 1], sizes = [8, 8, 8], strides = [1, 1, 1]} : vector<8x8x12xf32> to vector<8x8x8xf32>
    %58 = arith.mulf %2, %57 : vector<8x8x8xf32>
    %cst_18 = arith.constant dense<0.000000e+00> : vector<8x8xf32>
    %59 = vector.multi_reduction <add>, %58, %cst_18 [0] : vector<8x8x8xf32> to vector<8x8xf32>
    %cst_19 = arith.constant 1.250000e-01 : f32
    %60 = vector.broadcast %cst_19 : f32 to vector<8x8xf32>
    %61 = arith.mulf %59, %60 : vector<8x8xf32>
    %62 = arith.maximumf %46, %61 : vector<8x8xf32>
    %63 = arith.subf %46, %62 : vector<8x8xf32>
    %64 = math.exp %63 : vector<8x8xf32>
    %65 = arith.subf %61, %62 : vector<8x8xf32>
    %66 = math.exp %65 : vector<8x8xf32>
    %67 = arith.mulf %52, %64 : vector<8x8xf32>
    %68 = arith.addf %67, %66 : vector<8x8xf32>
    %69 = arith.mulf %56, %64 : vector<8x8xf32>
    %cst_20 = arith.constant 3.000000e+00 : f32
    %70 = vector.broadcast %cst_20 : f32 to vector<8x8xf32>
    %71 = arith.mulf %66, %70 : vector<8x8xf32>
    %72 = arith.addf %69, %71 : vector<8x8xf32>
    %73 = tpu.reciprocal %68 {approx = true} : vector<8x8xf32> -> vector<8x8xf32>
    %74 = arith.mulf %72, %73 : vector<8x8xf32>
    %c0_21 = arith.constant 0 : index
    %c0_22 = arith.constant 0 : index
    %c0_23 = arith.constant 0 : index
    %75 = vector.load %arg4[%c0_21, %c0_22, %c0_23] : memref<1x8x8xf32, #tpu.memory_space<vmem>>, vector<1x8x8xf32>
    %76 = vector.shape_cast %75 : vector<1x8x8xf32> to vector<8x8xf32>
    %77 = vector.shape_cast %74 : vector<8x8xf32> to vector<1x8x8xf32>
    tpu.vector_store %arg4[%c0_21, %c0_22, %c0_23], %77 {strides = array<i32>} : memref<1x8x8xf32, #tpu.memory_space<vmem>>, vector<1x8x8xf32>,
    return
  }
  func.func @transform_0(%arg0: i32, %arg1: i32) -> (i32, i32, i32, i32) {
    %c0_i32 = arith.constant 0 : i32
    %c0_i32_0 = arith.constant 0 : i32
    %c0_i32_1 = arith.constant 0 : i32
    return %arg0, %c0_i32, %arg1, %c0_i32_0 : i32, i32, i32, i32
  }
  func.func @transform_1(%arg0: i32, %arg1: i32) -> (i32, i32, i32, i32) {
    %c0_i32 = arith.constant 0 : i32
    %c0_i32_0 = arith.constant 0 : i32
    %c0_i32_1 = arith.constant 0 : i32
    return %arg0, %c0_i32, %arg1, %c0_i32_0 : i32, i32, i32, i32
  }
  func.func @transform_2(%arg0: i32, %arg1: i32) -> (i32, i32, i32) {
    %c0_i32 = arith.constant 0 : i32
    %c0_i32_0 = arith.constant 0 : i32
    return %arg0, %arg1, %c0_i32 : i32, i32, i32
  }
}

module attributes {stable_mosaic.version = 11 : i64} {
  func.func @_conv_gemm_kernel(%arg0: i32, %arg1: i32, %arg2: memref<1x27x64xbf16, #tpu.memory_space<vmem>>, %arg3: memref<8x27xbf16, #tpu.memory_space<vmem>>, %arg4: memref<8x1xf32, #tpu.memory_space<vmem>>, %arg5: memref<1x8x64xbf16, #tpu.memory_space<vmem>>) attributes {dimension_semantics = [#tpu.dimension_semantics<parallel>, #tpu.dimension_semantics<parallel>], iteration_bounds = array<i64: 2, 1>, scalar_prefetch = 0 : i64, scratch_operands = 0 : i64, tpu.core_type = #tpu.core_type<tc>, window_params = [{transform_indices = @transform_0, window_bounds = array<i64: 1, 27, 64>}, {pipeline_mode = #tpu.pipeline_mode<synchronous>, transform_indices = @transform_1, window_bounds = array<i64: 8, 27>}, {pipeline_mode = #tpu.pipeline_mode<synchronous>, transform_indices = @transform_2, window_bounds = array<i64: 8, 1>}, {transform_indices = @transform_3, window_bounds = array<i64: 1, 8, 64>}]} {
    %c0 = arith.constant 0 : index
    %c0_0 = arith.constant 0 : index
    %0 = vector.load %arg3[%c0, %c0_0] : memref<8x27xbf16, #tpu.memory_space<vmem>>, vector<8x27xbf16>
    %c0_1 = arith.constant 0 : index
    %c0_2 = arith.constant 0 : index
    %c0_3 = arith.constant 0 : index
    %1 = vector.load %arg2[%c0_1, %c0_2, %c0_3] : memref<1x27x64xbf16, #tpu.memory_space<vmem>>, vector<1x27x64xbf16>
    %2 = vector.shape_cast %1 : vector<1x27x64xbf16> to vector<27x64xbf16>
    %cst = arith.constant dense<0.000000e+00> : vector<8x64xf32>
    %3 = tpu.matmul %0, %2, %cst {dimension_numbers = #tpu.dot_dimension_numbers<[1], [0], [0], [1], [0, 0, 1, 1], [], []>} : vector<8x27xbf16>, vector<27x64xbf16>, vector<8x64xf32> -> vector<8x64xf32>
    %c0_4 = arith.constant 0 : index
    %c0_5 = arith.constant 0 : index
    %4 = vector.load %arg4[%c0_4, %c0_5] : memref<8x1xf32, #tpu.memory_space<vmem>>, vector<8x1xf32>
    %5 = vector.broadcast %4 : vector<8x1xf32> to vector<8x64xf32>
    %6 = arith.addf %3, %5 : vector<8x64xf32>
    %cst_6 = arith.constant 0.000000e+00 : f32
    %7 = vector.broadcast %cst_6 : f32 to vector<8x64xf32>
    %8 = arith.maximumf %6, %7 : vector<8x64xf32>
    %9 = arith.truncf %8 : vector<8x64xf32> to vector<8x64xbf16>
    %c0_7 = arith.constant 0 : index
    %c0_8 = arith.constant 0 : index
    %c0_9 = arith.constant 0 : index
    %10 = vector.load %arg5[%c0_7, %c0_8, %c0_9] : memref<1x8x64xbf16, #tpu.memory_space<vmem>>, vector<1x8x64xbf16>
    %11 = vector.shape_cast %10 : vector<1x8x64xbf16> to vector<8x64xbf16>
    %12 = vector.shape_cast %9 : vector<8x64xbf16> to vector<1x8x64xbf16>
    tpu.vector_store %arg5[%c0_7, %c0_8, %c0_9], %12 {strides = array<i32>} : memref<1x8x64xbf16, #tpu.memory_space<vmem>>, vector<1x8x64xbf16>,
    return
  }
  func.func @transform_0(%arg0: i32, %arg1: i32) -> (i32, i32, i32) {
    %c0_i32 = arith.constant 0 : i32
    %c0_i32_0 = arith.constant 0 : i32
    return %arg0, %c0_i32, %arg1 : i32, i32, i32
  }
  func.func @transform_1(%arg0: i32, %arg1: i32) -> (i32, i32) {
    %c0_i32 = arith.constant 0 : i32
    %c0_i32_0 = arith.constant 0 : i32
    %c0_i32_1 = arith.constant 0 : i32
    return %c0_i32, %c0_i32_0 : i32, i32
  }
  func.func @transform_2(%arg0: i32, %arg1: i32) -> (i32, i32) {
    %c0_i32 = arith.constant 0 : i32
    %c0_i32_0 = arith.constant 0 : i32
    %c0_i32_1 = arith.constant 0 : i32
    return %c0_i32, %c0_i32_0 : i32, i32
  }
  func.func @transform_3(%arg0: i32, %arg1: i32) -> (i32, i32, i32) {
    %c0_i32 = arith.constant 0 : i32
    %c0_i32_0 = arith.constant 0 : i32
    return %arg0, %c0_i32, %arg1 : i32, i32, i32
  }
}

module attributes {stable_mosaic.version = 11 : i64} {
  func.func @_conv_gemm_kernel(%arg0: i32, %arg1: i32, %arg2: memref<1x72x16xbf16, #tpu.memory_space<vmem>>, %arg3: memref<16x72xbf16, #tpu.memory_space<vmem>>, %arg4: memref<16x1xf32, #tpu.memory_space<vmem>>, %arg5: memref<1x16x16xbf16, #tpu.memory_space<vmem>>) attributes {dimension_semantics = [#tpu.dimension_semantics<parallel>, #tpu.dimension_semantics<parallel>], iteration_bounds = array<i64: 2, 1>, scalar_prefetch = 0 : i64, scratch_operands = 0 : i64, tpu.core_type = #tpu.core_type<tc>, window_params = [{transform_indices = @transform_0, window_bounds = array<i64: 1, 72, 16>}, {pipeline_mode = #tpu.pipeline_mode<synchronous>, transform_indices = @transform_1, window_bounds = array<i64: 16, 72>}, {pipeline_mode = #tpu.pipeline_mode<synchronous>, transform_indices = @transform_2, window_bounds = array<i64: 16, 1>}, {transform_indices = @transform_3, window_bounds = array<i64: 1, 16, 16>}]} {
    %c0 = arith.constant 0 : index
    %c0_0 = arith.constant 0 : index
    %0 = vector.load %arg3[%c0, %c0_0] : memref<16x72xbf16, #tpu.memory_space<vmem>>, vector<16x72xbf16>
    %c0_1 = arith.constant 0 : index
    %c0_2 = arith.constant 0 : index
    %c0_3 = arith.constant 0 : index
    %1 = vector.load %arg2[%c0_1, %c0_2, %c0_3] : memref<1x72x16xbf16, #tpu.memory_space<vmem>>, vector<1x72x16xbf16>
    %2 = vector.shape_cast %1 : vector<1x72x16xbf16> to vector<72x16xbf16>
    %cst = arith.constant dense<0.000000e+00> : vector<16x16xf32>
    %3 = tpu.matmul %0, %2, %cst {dimension_numbers = #tpu.dot_dimension_numbers<[1], [0], [0], [1], [0, 0, 1, 1], [], []>} : vector<16x72xbf16>, vector<72x16xbf16>, vector<16x16xf32> -> vector<16x16xf32>
    %c0_4 = arith.constant 0 : index
    %c0_5 = arith.constant 0 : index
    %4 = vector.load %arg4[%c0_4, %c0_5] : memref<16x1xf32, #tpu.memory_space<vmem>>, vector<16x1xf32>
    %5 = vector.broadcast %4 : vector<16x1xf32> to vector<16x16xf32>
    %6 = arith.addf %3, %5 : vector<16x16xf32>
    %cst_6 = arith.constant 0.000000e+00 : f32
    %7 = vector.broadcast %cst_6 : f32 to vector<16x16xf32>
    %8 = arith.maximumf %6, %7 : vector<16x16xf32>
    %9 = arith.truncf %8 : vector<16x16xf32> to vector<16x16xbf16>
    %c0_7 = arith.constant 0 : index
    %c0_8 = arith.constant 0 : index
    %c0_9 = arith.constant 0 : index
    %10 = vector.load %arg5[%c0_7, %c0_8, %c0_9] : memref<1x16x16xbf16, #tpu.memory_space<vmem>>, vector<1x16x16xbf16>
    %11 = vector.shape_cast %10 : vector<1x16x16xbf16> to vector<16x16xbf16>
    %12 = vector.shape_cast %9 : vector<16x16xbf16> to vector<1x16x16xbf16>
    tpu.vector_store %arg5[%c0_7, %c0_8, %c0_9], %12 {strides = array<i32>} : memref<1x16x16xbf16, #tpu.memory_space<vmem>>, vector<1x16x16xbf16>,
    return
  }
  func.func @transform_0(%arg0: i32, %arg1: i32) -> (i32, i32, i32) {
    %c0_i32 = arith.constant 0 : i32
    %c0_i32_0 = arith.constant 0 : i32
    return %arg0, %c0_i32, %arg1 : i32, i32, i32
  }
  func.func @transform_1(%arg0: i32, %arg1: i32) -> (i32, i32) {
    %c0_i32 = arith.constant 0 : i32
    %c0_i32_0 = arith.constant 0 : i32
    %c0_i32_1 = arith.constant 0 : i32
    return %c0_i32, %c0_i32_0 : i32, i32
  }
  func.func @transform_2(%arg0: i32, %arg1: i32) -> (i32, i32) {
    %c0_i32 = arith.constant 0 : i32
    %c0_i32_0 = arith.constant 0 : i32
    %c0_i32_1 = arith.constant 0 : i32
    return %c0_i32, %c0_i32_0 : i32, i32
  }
  func.func @transform_3(%arg0: i32, %arg1: i32) -> (i32, i32, i32) {
    %c0_i32 = arith.constant 0 : i32
    %c0_i32_0 = arith.constant 0 : i32
    return %arg0, %c0_i32, %arg1 : i32, i32, i32
  }
}

module attributes {stable_mosaic.version = 11 : i64} {
  func.func @_costvol_softargmin_kernel(%arg0: i32, %arg1: i32, %arg2: memref<1x16x4x4xbf16, #tpu.memory_space<vmem>>, %arg3: memref<1x16x4x6xbf16, #tpu.memory_space<vmem>>, %arg4: memref<1x4x4xf32, #tpu.memory_space<vmem>>) attributes {dimension_semantics = [#tpu.dimension_semantics<parallel>, #tpu.dimension_semantics<parallel>], iteration_bounds = array<i64: 2, 1>, scalar_prefetch = 0 : i64, scratch_operands = 0 : i64, tpu.core_type = #tpu.core_type<tc>, window_params = [{transform_indices = @transform_0, window_bounds = array<i64: 1, 16, 4, 4>}, {transform_indices = @transform_1, window_bounds = array<i64: 1, 16, 4, 6>}, {transform_indices = @transform_2, window_bounds = array<i64: 1, 4, 4>}]} {
    %c0 = arith.constant 0 : index
    %c0_0 = arith.constant 0 : index
    %c0_1 = arith.constant 0 : index
    %c0_2 = arith.constant 0 : index
    %0 = vector.load %arg2[%c0, %c0_0, %c0_1, %c0_2] : memref<1x16x4x4xbf16, #tpu.memory_space<vmem>>, vector<1x16x4x4xbf16>
    %1 = vector.shape_cast %0 : vector<1x16x4x4xbf16> to vector<16x4x4xbf16>
    %2 = arith.extf %1 : vector<16x4x4xbf16> to vector<16x4x4xf32>
    %c0_3 = arith.constant 0 : index
    %c0_4 = arith.constant 0 : index
    %c0_5 = arith.constant 0 : index
    %c0_6 = arith.constant 0 : index
    %3 = vector.load %arg3[%c0_3, %c0_4, %c0_5, %c0_6] : memref<1x16x4x6xbf16, #tpu.memory_space<vmem>>, vector<1x16x4x6xbf16>
    %4 = vector.shape_cast %3 : vector<1x16x4x6xbf16> to vector<16x4x6xbf16>
    %5 = arith.extf %4 : vector<16x4x6xbf16> to vector<16x4x6xf32>
    %cst = arith.constant -1.000000e+30 : f32
    %6 = vector.broadcast %cst : f32 to vector<4x4xf32>
    %cst_7 = arith.constant 0.000000e+00 : f32
    %7 = vector.broadcast %cst_7 : f32 to vector<4x4xf32>
    %cst_8 = arith.constant 0.000000e+00 : f32
    %8 = vector.broadcast %cst_8 : f32 to vector<4x4xf32>
    %9 = vector.extract_strided_slice %5 {offsets = [0, 0, 2], sizes = [16, 4, 4], strides = [1, 1, 1]} : vector<16x4x6xf32> to vector<16x4x4xf32>
    %10 = arith.mulf %2, %9 : vector<16x4x4xf32>
    %cst_9 = arith.constant dense<0.000000e+00> : vector<4x4xf32>
    %11 = vector.multi_reduction <add>, %10, %cst_9 [0] : vector<16x4x4xf32> to vector<4x4xf32>
    %cst_10 = arith.constant 6.250000e-02 : f32
    %12 = vector.broadcast %cst_10 : f32 to vector<4x4xf32>
    %13 = arith.mulf %11, %12 : vector<4x4xf32>
    %14 = arith.maximumf %6, %13 : vector<4x4xf32>
    %15 = arith.subf %6, %14 : vector<4x4xf32>
    %16 = math.exp %15 : vector<4x4xf32>
    %17 = arith.subf %13, %14 : vector<4x4xf32>
    %18 = math.exp %17 : vector<4x4xf32>
    %19 = arith.mulf %7, %16 : vector<4x4xf32>
    %20 = arith.addf %19, %18 : vector<4x4xf32>
    %21 = arith.mulf %8, %16 : vector<4x4xf32>
    %cst_11 = arith.constant 0.000000e+00 : f32
    %22 = vector.broadcast %cst_11 : f32 to vector<4x4xf32>
    %23 = arith.mulf %18, %22 : vector<4x4xf32>
    %24 = arith.addf %21, %23 : vector<4x4xf32>
    %25 = vector.extract_strided_slice %5 {offsets = [0, 0, 1], sizes = [16, 4, 4], strides = [1, 1, 1]} : vector<16x4x6xf32> to vector<16x4x4xf32>
    %26 = arith.mulf %2, %25 : vector<16x4x4xf32>
    %cst_12 = arith.constant dense<0.000000e+00> : vector<4x4xf32>
    %27 = vector.multi_reduction <add>, %26, %cst_12 [0] : vector<16x4x4xf32> to vector<4x4xf32>
    %cst_13 = arith.constant 6.250000e-02 : f32
    %28 = vector.broadcast %cst_13 : f32 to vector<4x4xf32>
    %29 = arith.mulf %27, %28 : vector<4x4xf32>
    %30 = arith.maximumf %14, %29 : vector<4x4xf32>
    %31 = arith.subf %14, %30 : vector<4x4xf32>
    %32 = math.exp %31 : vector<4x4xf32>
    %33 = arith.subf %29, %30 : vector<4x4xf32>
    %34 = math.exp %33 : vector<4x4xf32>
    %35 = arith.mulf %20, %32 : vector<4x4xf32>
    %36 = arith.addf %35, %34 : vector<4x4xf32>
    %37 = arith.mulf %24, %32 : vector<4x4xf32>
    %cst_14 = arith.constant 1.000000e+00 : f32
    %38 = vector.broadcast %cst_14 : f32 to vector<4x4xf32>
    %39 = arith.mulf %34, %38 : vector<4x4xf32>
    %40 = arith.addf %37, %39 : vector<4x4xf32>
    %41 = tpu.reciprocal %36 {approx = true} : vector<4x4xf32> -> vector<4x4xf32>
    %42 = arith.mulf %40, %41 : vector<4x4xf32>
    %c0_15 = arith.constant 0 : index
    %c0_16 = arith.constant 0 : index
    %c0_17 = arith.constant 0 : index
    %43 = vector.load %arg4[%c0_15, %c0_16, %c0_17] : memref<1x4x4xf32, #tpu.memory_space<vmem>>, vector<1x4x4xf32>
    %44 = vector.shape_cast %43 : vector<1x4x4xf32> to vector<4x4xf32>
    %45 = vector.shape_cast %42 : vector<4x4xf32> to vector<1x4x4xf32>
    tpu.vector_store %arg4[%c0_15, %c0_16, %c0_17], %45 {strides = array<i32>} : memref<1x4x4xf32, #tpu.memory_space<vmem>>, vector<1x4x4xf32>,
    return
  }
  func.func @transform_0(%arg0: i32, %arg1: i32) -> (i32, i32, i32, i32) {
    %c0_i32 = arith.constant 0 : i32
    %c0_i32_0 = arith.constant 0 : i32
    %c0_i32_1 = arith.constant 0 : i32
    return %arg0, %c0_i32, %arg1, %c0_i32_0 : i32, i32, i32, i32
  }
  func.func @transform_1(%arg0: i32, %arg1: i32) -> (i32, i32, i32, i32) {
    %c0_i32 = arith.constant 0 : i32
    %c0_i32_0 = arith.constant 0 : i32
    %c0_i32_1 = arith.constant 0 : i32
    return %arg0, %c0_i32, %arg1, %c0_i32_0 : i32, i32, i32, i32
  }
  func.func @transform_2(%arg0: i32, %arg1: i32) -> (i32, i32, i32) {
    %c0_i32 = arith.constant 0 : i32
    %c0_i32_0 = arith.constant 0 : i32
    return %arg0, %arg1, %c0_i32 : i32, i32, i32
  }
}

</mosaic_0001>

<llo_original>
// kernel: _lambda_.11
$region0: #{_lambda_.11}
  #allocation0 [shape = 'u32[]', space=smem, size = 0x4, offset = 0x4, fixed_abs, tag = 'smem constant byte address 0x4 - core index']
  #allocation1 [shape = 'u32[72,128]{1,0:T(1,128)}', space=vmem, size = 0x9000, scoped, tag = 'internal scratch']
  %s0 = inlined_call_operand.vmem [shape: bf16[2,3,16,16], index: 0, kind: input, shape index: {}]
  %s1 = inlined_call_operand.vmem [shape: bf16[2,3,16,24], index: 1, kind: input, shape index: {}]
  %s2 = inlined_call_operand.hbm [shape: f32[2,16,16], index: 2, kind: output, shape index: {}]
  %s3 = sld [smem:[#allocation0]]
  $region41: #{_lambda_.11} parent=0
    _
  %s5 = ssub.s32 1, %s3
  %s6 = scalar_select 0, %s5, %s3
  $region1: #{_lambda_.11} parent=0
    #allocation2 [shape = 'u8[16384]{0}', space=vmem, size = 0x4000, scoped, tag = 'output window, operand 0']
    #allocation3 [shape = 's32[2]{0}', space=sflag, size = 0x8, scoped, tag = 'scoped memory for _lambda_.11']
    %7 = vsyncpa [#allocation3], 0
    %s8 = scalar_lea.sflag [#allocation3], 1
    %9 = vsyncpa %s8, 0
    loop: start=0, step=1, limit=4
    $region2: #{_lambda_.11} parent=1 // loop_pre_header
      _
    $region3: #{_lambda_.11} parent=1 // loop_header
      %s11 = sphi 0, %s15
      %p12 = scmp.ge.s32.totalorder %s11, 4
      %s18 = sphi 0, %s30
      %s19 = sphi 0, %s26
      %s20 = sphi 0, %s18
      %s21 = sphi 0, %s19
      %s22 = sphi 0, %s20
      %s23 = sphi 0, %s21
      %s35 = sphi 0, %s37
      %s38 = sphi 0, %s35
      %s39 = sphi 0, %s38
      %s55 = sphi 0, %s39
      %s63 = sphi 0, %s65
      %s66 = sphi 0, %s63
      %s67 = sphi 0, %s66
      %s83 = sphi 0, %s67
      %s91 = sphi 0, %s93
      %s94 = sphi 0, %s91
      %s95 = sphi 0, %s94
      %s111 = sphi 0, %s95
    $region4: #{_lambda_.11} parent=1 // loop_header_branch
      %14 = sbr.rel (%p12) target = $region8
    $region5: #{_lambda_.11} parent=1 // loop_body
      %s16 = ssub.s32 %s11, 1
      %s17 = ssub.s32 %s11, 2
      %s24 = sadd.s32 1, %s19
      %p25 = scmp.ge.s32.totalorder %s24, 1
      %s26 = scalar_select %p25, 0, %s24
      %s27 = sadd.s32 1, %s18
      %s28 = scalar_select %p25, %s27, %s18
      %p29 = scmp.ge.s32.totalorder %s28, 2
      %s30 = scalar_select %p29, 0, %s28
      %s31 = ssub.s32 %s18, %s30
      %s32 = ssub.s32 %s19, %s26
      %s33 = sor.u32 %s31, %s32
      %p34 = scmp.eq.s32.totalorder %s33, 0
      %s36 = sadd.s32 %s35, 1
      %s37 = scalar_select %p34, %s35, %s36
      %p40 = pneg %p34
      %p41 = scmp.eq.s32.totalorder %s11, 1
      %p42 = por %p40, %p41
      %p43 = scmp.ne.s32.totalorder %s35, %s38
      %p44 = scmp.eq.s32.totalorder %s11, 0
      %p45 = por %p43, %p44
      %p46 = scmp.ne.s32.totalorder %s35, %s38
      %p47 = scmp.eq.s32.totalorder %s16, 1
      %p48 = por %p46, %p47
      %p49 = scmp.ne.s32.totalorder %s38, %s39
      %p50 = scmp.eq.s32.totalorder %s16, 0
      %p51 = por %p49, %p50
      %p52 = scmp.ne.s32.totalorder %s38, %s39
      %p53 = scmp.eq.s32.totalorder %s17, 1
      %p54 = por %p52, %p53
      %p56 = scmp.ne.s32.totalorder %s39, %s55
      %p57 = scmp.eq.s32.totalorder %s17, 0
      %p58 = por %p56, %p57
      %s59 = ssub.s32 %s18, %s30
      %s60 = ssub.s32 %s19, %s26
      %s61 = sor.u32 %s59, %s60
      %p62 = scmp.eq.s32.totalorder %s61, 0
      %s64 = sadd.s32 %s63, 1
      %s65 = scalar_select %p62, %s63, %s64
      %p68 = pneg %p62
      %p69 = scmp.eq.s32.totalorder %s11, 1
      %p70 = por %p68, %p69
      %p71 = scmp.ne.s32.totalorder %s63, %s66
      %p72 = scmp.eq.s32.totalorder %s11, 0
      %p73 = por %p71, %p72
      %p74 = scmp.ne.s32.totalorder %s63, %s66
      %p75 = scmp.eq.s32.totalorder %s16, 1
      %p76 = por %p74, %p75
      %p77 = scmp.ne.s32.totalorder %s66, %s67
      %p78 = scmp.eq.s32.totalorder %s16, 0
      %p79 = por %p77, %p78
      %p80 = scmp.ne.s32.totalorder %s66, %s67
      %p81 = scmp.eq.s32.totalorder %s17, 1
      %p82 = por %p80, %p81
      %p84 = scmp.ne.s32.totalorder %s67, %s83
      %p85 = scmp.eq.s32.totalorder %s17, 0
      %p86 = por %p84, %p85
      %s87 = ssub.s32 %s18, %s30
      %s88 = ssub.s32 %s19, %s26
      %s89 = sor.u32 %s87, %s88
      %p90 = scmp.eq.s32.totalorder %s89, 0
      %s92 = sadd.s32 %s91, 1
      %s93 = scalar_select %p90, %s91, %s92
      %p96 = pneg %p90
      %p97 = scmp.eq.s32.totalorder %s11, 1
      %p98 = por %p96, %p97
      %p99 = scmp.ne.s32.totalorder %s91, %s94
      %p100 = scmp.eq.s32.totalorder %s11, 0
      %p101 = por %p99, %p100
      %p102 = scmp.ne.s32.totalorder %s91, %s94
      %p103 = scmp.eq.s32.totalorder %s16, 1
      %p104 = por %p102, %p103
      %p105 = scmp.ne.s32.totalorder %s94, %s95
      %p106 = scmp.eq.s32.totalorder %s16, 0
      %p107 = por %p105, %p106
      %p108 = scmp.ne.s32.totalorder %s94, %s95
      %p109 = scmp.eq.s32.totalorder %s17, 1
      %p110 = por %p108, %p109
      %p112 = scmp.ne.s32.totalorder %s95, %s111
      %p113 = scmp.eq.s32.totalorder %s17, 0
      %p114 = por %p112, %p113
      %p115 = scmp.le.s32.totalorder 1, %s11
      %p116 = scmp.lt.s32.totalorder %s11, 3
      %p117 = pnand %p115, %p116
      %p118 = pneg %p117
      // Predicated region
      $region9: #{_lambda_.11} parent=5 // pred_check
        _
      $region10: #{_lambda_.11} parent=5 // pred_check_branch
        %120 = sbr.rel (%p117) target = $region12
      $region11: #{_lambda_.11} parent=5 // pred_region
        %s121 = ssub.s32 %s11, 1
      $region12: #{_lambda_.11} parent=5 // pred_fallthru
        _
      %p122 = scmp.lt.s32.totalorder %s11, 2
      // Predicated region
      $region13: #{_lambda_.11} parent=5 // pred_check
        %p123 = pneg %p122
      $region14: #{_lambda_.11} parent=5 // pred_check_branch
        %125 = sbr.rel (%p123) target = $region16
      $region15: #{_lambda_.11} parent=5 // pred_region
        // Predicated region
        $region17: #{_lambda_.11} parent=15 // pred_check
          %p126 = pneg %p45
        $region18: #{_lambda_.11} parent=15 // pred_check_branch
          %128 = sbr.rel (%p126) target = $region20
        $region19: #{_lambda_.11} parent=15 // pred_region
          %s129 = smul.u32 2, %s19
          %p130 = scmp.lt.s32.totalorder %s18, 1
          %s131 = scalar_select %p130, %s18, 1
          %p132 = scmp.lt.s32.totalorder %s129, 1
          %s133 = scalar_select %p132, %s129, 1
          %s134 = smul.addr %s131, 6
          %s135 = sadd.s32 %s133, %s134
          %s136 = smul.addr %s135, 4
          %s137 = scalar_lea.vmem %s0, %s136
          %s138 = smul.u32 2, %s19
        $region20: #{_lambda_.11} parent=15 // pred_fallthru
          _
        // Predicated region
        $region21: #{_lambda_.11} parent=15 // pred_check
          %p139 = pneg %p73
        $region22: #{_lambda_.11} parent=15 // pred_check_branch
          %141 = sbr.rel (%p139) target = $region24
        $region23: #{_lambda_.11} parent=15 // pred_region
          %s142 = smul.u32 2, %s19
          %p143 = scmp.lt.s32.totalorder %s18, 1
          %s144 = scalar_select %p143, %s18, 1
          %p145 = scmp.lt.s32.totalorder %s142, 1
          %s146 = scalar_select %p145, %s142, 1
          %s147 = smul.addr %s144, 6
          %s148 = sadd.s32 %s146, %s147
          %s149 = smul.addr %s148, 4
          %s150 = scalar_lea.vmem %s1, %s149
          %s151 = smul.u32 2, %s19
        $region24: #{_lambda_.11} parent=15 // pred_fallthru
          _
      $region16: #{_lambda_.11} parent=5 // pred_fallthru
        _
      %p152 = scmp.le.s32.totalorder 1, %s11
      %p153 = scmp.lt.s32.totalorder %s11, 3
      %p154 = pnand %p152, %p153
      %p155 = pneg %p154
      // Predicated region
      $region25: #{_lambda_.11} parent=5 // pred_check
        _
      $region26: #{_lambda_.11} parent=5 // pred_check_branch
        %157 = sbr.rel (%p154) target = $region28
      $region27: #{_lambda_.11} parent=5 // pred_region
        %s158 = ssub.s32 %s11, 1
        %s159 = smul.u32 2, %s21
        %p160 = scmp.lt.s32.totalorder %s20, 1
        %s161 = scalar_select %p160, %s20, 1
        %p162 = scmp.lt.s32.totalorder %s159, 1
        %s163 = scalar_select %p162, %s159, 1
        %s164 = smul.addr %s161, 6
        %s165 = sadd.s32 %s163, %s164
        %s166 = smul.addr %s165, 4
        %s167 = scalar_lea.vmem %s0, %s166
        %p168 = pneg %p51
        %p169 = pneg %p48
        %s170 = smul.u32 2, %s21
        %p171 = scmp.lt.s32.totalorder %s20, 1
        %s172 = scalar_select %p171, %s20, 1
        %p173 = scmp.lt.s32.totalorder %s170, 1
        %s174 = scalar_select %p173, %s170, 1
        %s175 = smul.addr %s172, 6
        %s176 = sadd.s32 %s174, %s175
        %s177 = smul.addr %s176, 4
        %s178 = scalar_lea.vmem %s1, %s177
        %p179 = pneg %p79
        %p180 = pneg %p76
        %p181 = pneg %p107
        %p182 = pneg %p104
        %s183 = sand.u32 %s94, 1
        %s184 = scalar_lea.sflag [#allocation3], %s183
        %s185 = sand.u32 %s94, 1
        %s186 = smul.addr %s185, 16
        %s187 = scalar_lea.vmem [#allocation2], %s186
        %s188 = smul.u32 2, %s21
        %p189 = scmp.lt.s32.totalorder %s20, 1
        %s190 = scalar_select %p189, %s20, 1
        %p191 = scmp.lt.s32.totalorder %s188, 1
        %s192 = scalar_select %p191, %s188, 1
        %s193 = smul.addr %s190, 6
        %s194 = sadd.s32 %s192, %s193
        %s195 = smul.addr %s194, 4
        %s196 = scalar_lea.vmem %s0, %s195
        %s197 = smul.u32 2, %s21
        %s198 = smul.u32 2, %s21
        %p199 = scmp.lt.s32.totalorder %s20, 1
        %s200 = scalar_select %p199, %s20, 1
        %p201 = scmp.lt.s32.totalorder %s198, 1
        %s202 = scalar_select %p201, %s198, 1
        %s203 = smul.addr %s200, 6
        %s204 = sadd.s32 %s202, %s203
        %s205 = smul.addr %s204, 4
        %s206 = scalar_lea.vmem %s1, %s205
        %s207 = smul.u32 2, %s21
        %s208 = smul.u32 2, %s21
        %v209 = vld [vmem:[%s196] sm:$0xf]
        %v210 = vld [vmem:[%s196 + $0x4] sm:$0xf]
        %v211 = vld [vmem:[%s196 + $0x8] sm:$0xf]
        %v212 = vld [vmem:[%s196 + $0xc] sm:$0xf]
        %v213 = vld [vmem:[%s196 + $0x10] sm:$0xf]
        %v214 = vld [vmem:[%s196 + $0x14] sm:$0xf]
        %v215 = vunpack.c.l.bf16 %v209
        %v216 = vunpack.c.l.bf16 %v210
        %v217 = vunpack.c.l.bf16 %v211
        %v218 = vunpack.c.l.bf16 %v212
        %v219 = vunpack.c.l.bf16 %v213
        %v220 = vunpack.c.l.bf16 %v214
        %v221 = vld [vmem:[%s206] sm:$0xf]
        %v222 = vld [vmem:[%s206 + $0x4] sm:$0xf]
        %v223 = vld [vmem:[%s206 + $0x8] sm:$0xf]
        %v224 = vld [vmem:[%s206 + $0xc] sm:$0xf]
        %v225 = vld [vmem:[%s206 + $0x10] sm:$0xf]
        %v226 = vld [vmem:[%s206 + $0x14] sm:$0xf]
        %v227 = vunpack.c.l.bf16 %v221
        %v228 = vunpack.c.l.bf16 %v222
        %v229 = vunpack.c.l.bf16 %v223
        %v230 = vunpack.c.l.bf16 %v224
        %v231 = vunpack.c.l.bf16 %v225
        %v232 = vunpack.c.l.bf16 %v226
        %239 = vrot.lane.b32.xlu0 %v227, 120
        %v240 = vpop.permute.xlu0 %239
        %241 = vrot.lane.b32.xlu0 %v228, 120
        %v242 = vpop.permute.xlu0 %241
        %243 = vrot.lane.b32.xlu0 %v229, 120
        %v244 = vpop.permute.xlu0 %243
        %245 = vrot.lane.b32.xlu0 %v230, 120
        %v246 = vpop.permute.xlu0 %245
        %247 = vrot.lane.b32.xlu0 %v231, 120
        %v248 = vpop.permute.xlu0 %247
        %249 = vrot.lane.b32.xlu0 %v232, 120
        %v250 = vpop.permute.xlu0 %249
        %v257 = vmul.f32 %v215, %v240
        %v258 = vmul.f32 %v216, %v242
        %v259 = vmul.f32 %v217, %v244
        %v260 = vmul.f32 %v218, %v246
        %v261 = vmul.f32 %v219, %v248
        %v262 = vmul.f32 %v220, %v250
        %vm263 = vcmask 130048
        %v264 = vsel %vm263, %v257, 0.0
        %v265 = vsel %vm263, %v259, 0.0
        %v266 = vadd.f32 %v264, %v265
        %v267 = vsel %vm263, %v261, 0.0
        %v268 = vadd.f32 %v266, %v267
        %v269 = vsel %vm263, %v258, 0.0
        %v270 = vsel %vm263, %v260, 0.0
        %v271 = vadd.f32 %v269, %v270
        %v272 = vsel %vm263, %v262, 0.0
        %v273 = vadd.f32 %v271, %v272
        %v274 = vmul.f32 %v268, 0.33333334
        %v275 = vmul.f32 %v273, 0.33333334
        %v276 = vmax.f32 %v274, -1e+30
        %v277 = vmax.f32 %v275, -1e+30
        %v278 = vsub.f32 -1e+30, %v276
        %v279 = vsub.f32 -1e+30, %v277
        %v280 = vmul.f32 %v278, 1.442695
        %v281 = vpow.pop %v280
        %v282 = vmul.f32 %v279, 1.442695
        %v283 = vpow.pop %v282
        %v284 = vsub.f32 %v274, %v276
        %v285 = vsub.f32 %v275, %v277
        %v286 = vmul.f32 %v284, 1.442695
        %v287 = vpow.pop %v286
        %v288 = vmul.f32 %v285, 1.442695
        %v289 = vpow.pop %v288
        %v290 = vmul.f32 %v281, 0.0
        %v291 = vmul.f32 %v283, 0.0
        %v292 = vadd.f32 %v290, %v287
        %v293 = vadd.f32 %v291, %v289
        %v294 = vmul.f32 %v287, 0.0
        %v295 = vmul.f32 %v289, 0.0
        %v296 = vadd.f32 %v290, %v294
        %v297 = vadd.f32 %v291, %v295
        %298 = vrot.lane.b32.xlu0 %v227, 121
        %v299 = vpop.permute.xlu0 %298
        %300 = vrot.lane.b32.xlu0 %v228, 121
        %v301 = vpop.permute.xlu0 %300
        %302 = vrot.lane.b32.xlu0 %v229, 121
        %v303 = vpop.permute.xlu0 %302
        %304 = vrot.lane.b32.xlu0 %v230, 121
        %v305 = vpop.permute.xlu0 %304
        %306 = vrot.lane.b32.xlu0 %v231, 121
        %v307 = vpop.permute.xlu0 %306
        %308 = vrot.lane.b32.xlu0 %v232, 121
        %v309 = vpop.permute.xlu0 %308
        %v316 = vmul.f32 %v215, %v299
        %v317 = vmul.f32 %v216, %v301
        %v318 = vmul.f32 %v217, %v303
        %v319 = vmul.f32 %v218, %v305
        %v320 = vmul.f32 %v219, %v307
        %v321 = vmul.f32 %v220, %v309
        %v322 = vsel %vm263, %v316, 0.0
        %v323 = vsel %vm263, %v318, 0.0
        %v324 = vadd.f32 %v322, %v323
        %v325 = vsel %vm263, %v320, 0.0
        %v326 = vadd.f32 %v324, %v325
        %v327 = vsel %vm263, %v317, 0.0
        %v328 = vsel %vm263, %v319, 0.0
        %v329 = vadd.f32 %v327, %v328
        %v330 = vsel %vm263, %v321, 0.0
        %v331 = vadd.f32 %v329, %v330
        %v332 = vmul.f32 %v326, 0.33333334
        %v333 = vmul.f32 %v331, 0.33333334
        %v334 = vmax.f32 %v276, %v332
        %v335 = vmax.f32 %v277, %v333
        %v336 = vsub.f32 %v276, %v334
        %v337 = vsub.f32 %v277, %v335
        %v338 = vmul.f32 %v336, 1.442695
        %v339 = vpow.pop %v338
        %v340 = vmul.f32 %v337, 1.442695
        %v341 = vpow.pop %v340
        %v342 = vsub.f32 %v332, %v334
        %v343 = vsub.f32 %v333, %v335
        %v344 = vmul.f32 %v342, 1.442695
        %v345 = vpow.pop %v344
        %v346 = vmul.f32 %v343, 1.442695
        %v347 = vpow.pop %v346
        %v348 = vmul.f32 %v292, %v339
        %v349 = vmul.f32 %v293, %v341
        %v350 = vadd.f32 %v348, %v345
        %v351 = vadd.f32 %v349, %v347
        %v352 = vmul.f32 %v296, %v339
        %v353 = vmul.f32 %v297, %v341
        %v354 = vadd.f32 %v352, %v345
        %v355 = vadd.f32 %v353, %v347
        %356 = vrot.lane.b32.xlu0 %v227, 122
        %v357 = vpop.permute.xlu0 %356
        %358 = vrot.lane.b32.xlu0 %v228, 122
        %v359 = vpop.permute.xlu0 %358
        %360 = vrot.lane.b32.xlu0 %v229, 122
        %v361 = vpop.permute.xlu0 %360
        %362 = vrot.lane.b32.xlu0 %v230, 122
        %v363 = vpop.permute.xlu0 %362
        %364 = vrot.lane.b32.xlu0 %v231, 122
        %v365 = vpop.permute.xlu0 %364
        %366 = vrot.lane.b32.xlu0 %v232, 122
        %v367 = vpop.permute.xlu0 %366
        %v374 = vmul.f32 %v215, %v357
        %v375 = vmul.f32 %v216, %v359
        %v376 = vmul.f32 %v217, %v361
        %v377 = vmul.f32 %v218, %v363
        %v378 = vmul.f32 %v219, %v365
        %v379 = vmul.f32 %v220, %v367
        %v380 = vsel %vm263, %v374, 0.0
        %v381 = vsel %vm263, %v376, 0.0
        %v382 = vadd.f32 %v380, %v381
        %v383 = vsel %vm263, %v378, 0.0
        %v384 = vadd.f32 %v382, %v383
        %v385 = vsel %vm263, %v375, 0.0
        %v386 = vsel %vm263, %v377, 0.0
        %v387 = vadd.f32 %v385, %v386
        %v388 = vsel %vm263, %v379, 0.0
        %v389 = vadd.f32 %v387, %v388
        %v390 = vmul.f32 %v384, 0.33333334
        %v391 = vmul.f32 %v389, 0.33333334
        %v392 = vmax.f32 %v334, %v390
        %v393 = vmax.f32 %v335, %v391
        %v394 = vsub.f32 %v334, %v392
        %v395 = vsub.f32 %v335, %v393
        %v396 = vmul.f32 %v394, 1.442695
        %v397 = vpow.pop %v396
        %v398 = vmul.f32 %v395, 1.442695
        %v399 = vpow.pop %v398
        %v400 = vsub.f32 %v390, %v392
        %v401 = vsub.f32 %v391, %v393
        %v402 = vmul.f32 %v400, 1.442695
        %v403 = vpow.pop %v402
        %v404 = vmul.f32 %v401, 1.442695
        %v405 = vpow.pop %v404
        %v406 = vmul.f32 %v350, %v397
        %v407 = vmul.f32 %v351, %v399
        %v408 = vadd.f32 %v406, %v403
        %v409 = vadd.f32 %v407, %v405
        %v410 = vmul.f32 %v354, %v397
        %v411 = vmul.f32 %v355, %v399
        %v412 = vmul.f32 %v403, 2.0
        %v413 = vmul.f32 %v405, 2.0
        %v414 = vadd.f32 %v410, %v412
        %v415 = vadd.f32 %v411, %v413
        %416 = vrot.lane.b32.xlu0 %v227, 123
        %v417 = vpop.permute.xlu0 %416
        %418 = vrot.lane.b32.xlu0 %v228, 123
        %v419 = vpop.permute.xlu0 %418
        %420 = vrot.lane.b32.xlu0 %v229, 123
        %v421 = vpop.permute.xlu0 %420
        %422 = vrot.lane.b32.xlu0 %v230, 123
        %v423 = vpop.permute.xlu0 %422
        %424 = vrot.lane.b32.xlu0 %v231, 123
        %v425 = vpop.permute.xlu0 %424
        %426 = vrot.lane.b32.xlu0 %v232, 123
        %v427 = vpop.permute.xlu0 %426
        %v434 = vmul.f32 %v215, %v417
        %v435 = vmul.f32 %v216, %v419
        %v436 = vmul.f32 %v217, %v421
        %v437 = vmul.f32 %v218, %v423
        %v438 = vmul.f32 %v219, %v425
        %v439 = vmul.f32 %v220, %v427
        %v440 = vsel %vm263, %v434, 0.0
        %v441 = vsel %vm263, %v436, 0.0
        %v442 = vadd.f32 %v440, %v441
        %v443 = vsel %vm263, %v438, 0.0
        %v444 = vadd.f32 %v442, %v443
        %v445 = vsel %vm263, %v435, 0.0
        %v446 = vsel %vm263, %v437, 0.0
        %v447 = vadd.f32 %v445, %v446
        %v448 = vsel %vm263, %v439, 0.0
        %v449 = vadd.f32 %v447, %v448
        %v450 = vmul.f32 %v444, 0.33333334
        %v451 = vmul.f32 %v449, 0.33333334
        %v452 = vmax.f32 %v392, %v450
        %v453 = vmax.f32 %v393, %v451
        %v454 = vsub.f32 %v392, %v452
        %v455 = vsub.f32 %v393, %v453
        %v456 = vmul.f32 %v454, 1.442695
        %v457 = vpow.pop %v456
        %v458 = vmul.f32 %v455, 1.442695
        %v459 = vpow.pop %v458
        %v460 = vsub.f32 %v450, %v452
        %v461 = vsub.f32 %v451, %v453
        %v462 = vmul.f32 %v460, 1.442695
        %v463 = vpow.pop %v462
        %v464 = vmul.f32 %v461, 1.442695
        %v465 = vpow.pop %v464
        %v466 = vmul.f32 %v408, %v457
        %v467 = vmul.f32 %v409, %v459
        %v468 = vadd.f32 %v466, %v463
        %v469 = vadd.f32 %v467, %v465
        %v470 = vmul.f32 %v414, %v457
        %v471 = vmul.f32 %v415, %v459
        %v472 = vmul.f32 %v463, 3.0
        %v473 = vmul.f32 %v465, 3.0
        %v474 = vadd.f32 %v470, %v472
        %v475 = vadd.f32 %v471, %v473
        %476 = vrot.lane.b32.xlu0 %v227, 124
        %v477 = vpop.permute.xlu0 %476
        %478 = vrot.lane.b32.xlu0 %v228, 124
        %v479 = vpop.permute.xlu0 %478
        %480 = vrot.lane.b32.xlu0 %v229, 124
        %v481 = vpop.permute.xlu0 %480
        %482 = vrot.lane.b32.xlu0 %v230, 124
        %v483 = vpop.permute.xlu0 %482
        %484 = vrot.lane.b32.xlu0 %v231, 124
        %v485 = vpop.permute.xlu0 %484
        %486 = vrot.lane.b32.xlu0 %v232, 124
        %v487 = vpop.permute.xlu0 %486
        %v494 = vmul.f32 %v215, %v477
        %v495 = vmul.f32 %v216, %v479
        %v496 = vmul.f32 %v217, %v481
        %v497 = vmul.f32 %v218, %v483
        %v498 = vmul.f32 %v219, %v485
        %v499 = vmul.f32 %v220, %v487
        %v500 = vsel %vm263, %v494, 0.0
        %v501 = vsel %vm263, %v496, 0.0
        %v502 = vadd.f32 %v500, %v501
        %v503 = vsel %vm263, %v498, 0.0
        %v504 = vadd.f32 %v502, %v503
        %v505 = vsel %vm263, %v495, 0.0
        %v506 = vsel %vm263, %v497, 0.0
        %v507 = vadd.f32 %v505, %v506
        %v508 = vsel %vm263, %v499, 0.0
        %v509 = vadd.f32 %v507, %v508
        %v510 = vmul.f32 %v504, 0.33333334
        %v511 = vmul.f32 %v509, 0.33333334
        %v512 = vmax.f32 %v452, %v510
        %v513 = vmax.f32 %v453, %v511
        %v514 = vsub.f32 %v452, %v512
        %v515 = vsub.f32 %v453, %v513
        %v516 = vmul.f32 %v514, 1.442695
        %v517 = vpow.pop %v516
        %v518 = vmul.f32 %v515, 1.442695
        %v519 = vpow.pop %v518
        %v520 = vsub.f32 %v510, %v512
        %v521 = vsub.f32 %v511, %v513
        %v522 = vmul.f32 %v520, 1.442695
        %v523 = vpow.pop %v522
        %v524 = vmul.f32 %v521, 1.442695
        %v525 = vpow.pop %v524
        %v526 = vmul.f32 %v468, %v517
        %v527 = vmul.f32 %v469, %v519
        %v528 = vadd.f32 %v526, %v523
        %v529 = vadd.f32 %v527, %v525
        %v530 = vmul.f32 %v474, %v517
        %v531 = vmul.f32 %v475, %v519
        %v532 = vmul.f32 %v523, 4.0
        %v533 = vmul.f32 %v525, 4.0
        %v534 = vadd.f32 %v530, %v532
        %v535 = vadd.f32 %v531, %v533
        %536 = vrot.lane.b32.xlu0 %v227, 125
        %v537 = vpop.permute.xlu0 %536
        %538 = vrot.lane.b32.xlu0 %v228, 125
        %v539 = vpop.permute.xlu0 %538
        %540 = vrot.lane.b32.xlu0 %v229, 125
        %v541 = vpop.permute.xlu0 %540
        %542 = vrot.lane.b32.xlu0 %v230, 125
        %v543 = vpop.permute.xlu0 %542
        %544 = vrot.lane.b32.xlu0 %v231, 125
        %v545 = vpop.permute.xlu0 %544
        %546 = vrot.lane.b32.xlu0 %v232, 125
        %v547 = vpop.permute.xlu0 %546
        %v554 = vmul.f32 %v215, %v537
        %v555 = vmul.f32 %v216, %v539
        %v556 = vmul.f32 %v217, %v541
        %v557 = vmul.f32 %v218, %v543
        %v558 = vmul.f32 %v219, %v545
        %v559 = vmul.f32 %v220, %v547
        %v560 = vsel %vm263, %v554, 0.0
        %v561 = vsel %vm263, %v556, 0.0
        %v562 = vadd.f32 %v560, %v561
        %v563 = vsel %vm263, %v558, 0.0
        %v564 = vadd.f32 %v562, %v563
        %v565 = vsel %vm263, %v555, 0.0
        %v566 = vsel %vm263, %v557, 0.0
        %v567 = vadd.f32 %v565, %v566
        %v568 = vsel %vm263, %v559, 0.0
        %v569 = vadd.f32 %v567, %v568
        %v570 = vmul.f32 %v564, 0.33333334
        %v571 = vmul.f32 %v569, 0.33333334
        %v572 = vmax.f32 %v512, %v570
        %v573 = vmax.f32 %v513, %v571
        %v574 = vsub.f32 %v512, %v572
        %v575 = vsub.f32 %v513, %v573
        %v576 = vmul.f32 %v574, 1.442695
        %v577 = vpow.pop %v576
        %v578 = vmul.f32 %v575, 1.442695
        %v579 = vpow.pop %v578
        %v580 = vsub.f32 %v570, %v572
        %v581 = vsub.f32 %v571, %v573
        %v582 = vmul.f32 %v580, 1.442695
        %v583 = vpow.pop %v582
        %v584 = vmul.f32 %v581, 1.442695
        %v585 = vpow.pop %v584
        %v586 = vmul.f32 %v528, %v577
        %v587 = vmul.f32 %v529, %v579
        %v588 = vadd.f32 %v586, %v583
        %v589 = vadd.f32 %v587, %v585
        %v590 = vmul.f32 %v534, %v577
        %v591 = vmul.f32 %v535, %v579
        %v592 = vmul.f32 %v583, 5.0
        %v593 = vmul.f32 %v585, 5.0
        %v594 = vadd.f32 %v590, %v592
        %v595 = vadd.f32 %v591, %v593
        %596 = vrot.lane.b32.xlu0 %v227, 126
        %v597 = vpop.permute.xlu0 %596
        %598 = vrot.lane.b32.xlu0 %v228, 126
        %v599 = vpop.permute.xlu0 %598
        %600 = vrot.lane.b32.xlu0 %v229, 126
        %v601 = vpop.permute.xlu0 %600
        %602 = vrot.lane.b32.xlu0 %v230, 126
        %v603 = vpop.permute.xlu0 %602
        %604 = vrot.lane.b32.xlu0 %v231, 126
        %v605 = vpop.permute.xlu0 %604
        %606 = vrot.lane.b32.xlu0 %v232, 126
        %v607 = vpop.permute.xlu0 %606
        %v614 = vmul.f32 %v215, %v597
        %v615 = vmul.f32 %v216, %v599
        %v616 = vmul.f32 %v217, %v601
        %v617 = vmul.f32 %v218, %v603
        %v618 = vmul.f32 %v219, %v605
        %v619 = vmul.f32 %v220, %v607
        %v620 = vsel %vm263, %v614, 0.0
        %v621 = vsel %vm263, %v616, 0.0
        %v622 = vadd.f32 %v620, %v621
        %v623 = vsel %vm263, %v618, 0.0
        %v624 = vadd.f32 %v622, %v623
        %v625 = vsel %vm263, %v615, 0.0
        %v626 = vsel %vm263, %v617, 0.0
        %v627 = vadd.f32 %v625, %v626
        %v628 = vsel %vm263, %v619, 0.0
        %v629 = vadd.f32 %v627, %v628
        %v630 = vmul.f32 %v624, 0.33333334
        %v631 = vmul.f32 %v629, 0.33333334
        %v632 = vmax.f32 %v572, %v630
        %v633 = vmax.f32 %v573, %v631
        %v634 = vsub.f32 %v572, %v632
        %v635 = vsub.f32 %v573, %v633
        %v636 = vmul.f32 %v634, 1.442695
        %v637 = vpow.pop %v636
        %v638 = vmul.f32 %v635, 1.442695
        %v639 = vpow.pop %v638
        %v640 = vsub.f32 %v630, %v632
        %v641 = vsub.f32 %v631, %v633
        %v642 = vmul.f32 %v640, 1.442695
        %v643 = vpow.pop %v642
        %v644 = vmul.f32 %v641, 1.442695
        %v645 = vpow.pop %v644
        %v646 = vmul.f32 %v588, %v637
        %v647 = vmul.f32 %v589, %v639
        %v648 = vadd.f32 %v646, %v643
        %v649 = vadd.f32 %v647, %v645
        %v650 = vmul.f32 %v594, %v637
        %v651 = vmul.f32 %v595, %v639
        %v652 = vmul.f32 %v643, 6.0
        %v653 = vmul.f32 %v645, 6.0
        %v654 = vadd.f32 %v650, %v652
        %v655 = vadd.f32 %v651, %v653
        %656 = vrot.lane.b32.xlu0 %v227, 127
        %v657 = vpop.permute.xlu0 %656
        %658 = vrot.lane.b32.xlu0 %v228, 127
        %v659 = vpop.permute.xlu0 %658
        %660 = vrot.lane.b32.xlu0 %v229, 127
        %v661 = vpop.permute.xlu0 %660
        %662 = vrot.lane.b32.xlu0 %v230, 127
        %v663 = vpop.permute.xlu0 %662
        %664 = vrot.lane.b32.xlu0 %v231, 127
        %v665 = vpop.permute.xlu0 %664
        %666 = vrot.lane.b32.xlu0 %v232, 127
        %v667 = vpop.permute.xlu0 %666
        %v674 = vmul.f32 %v215, %v657
        %v675 = vmul.f32 %v216, %v659
        %v676 = vmul.f32 %v217, %v661
        %v677 = vmul.f32 %v218, %v663
        %v678 = vmul.f32 %v219, %v665
        %v679 = vmul.f32 %v220, %v667
        %v680 = vsel %vm263, %v674, 0.0
        %v681 = vsel %vm263, %v676, 0.0
        %v682 = vadd.f32 %v680, %v681
        %v683 = vsel %vm263, %v678, 0.0
        %v684 = vadd.f32 %v682, %v683
        %v685 = vsel %vm263, %v675, 0.0
        %v686 = vsel %vm263, %v677, 0.0
        %v687 = vadd.f32 %v685, %v686
        %v688 = vsel %vm263, %v679, 0.0
        %v689 = vadd.f32 %v687, %v688
        %v690 = vmul.f32 %v684, 0.33333334
        %v691 = vmul.f32 %v689, 0.33333334
        %v692 = vmax.f32 %v632, %v690
        %v693 = vmax.f32 %v633, %v691
        %v694 = vsub.f32 %v632, %v692
        %v695 = vsub.f32 %v633, %v693
        %v696 = vmul.f32 %v694, 1.442695
        %v697 = vpow.pop %v696
        %v698 = vmul.f32 %v695, 1.442695
        %v699 = vpow.pop %v698
        %v700 = vsub.f32 %v690, %v692
        %v701 = vsub.f32 %v691, %v693
        %v702 = vmul.f32 %v700, 1.442695
        %v703 = vpow.pop %v702
        %v704 = vmul.f32 %v701, 1.442695
        %v705 = vpow.pop %v704
        %v706 = vmul.f32 %v648, %v697
        %v707 = vmul.f32 %v649, %v699
        %v708 = vadd.f32 %v706, %v703
        %v709 = vadd.f32 %v707, %v705
        %v710 = vmul.f32 %v654, %v697
        %v711 = vmul.f32 %v655, %v699
        %v712 = vmul.f32 %v703, 7.0
        %v713 = vmul.f32 %v705, 7.0
        %v714 = vadd.f32 %v710, %v712
        %v715 = vadd.f32 %v711, %v713
        %v716 = vrcp.pop %v708
        %v717 = vrcp.pop %v709
        %v718 = vmul.f32 %v714, %v716
        %v719 = vmul.f32 %v715, %v717
        %720 = vst.msk [vmem:[%s187] sm:$0xff] %vm263, %v718
        %721 = vst.msk [vmem:[%s187 + $0x8] sm:$0xff] %vm263, %v719
        %s722 = sand.u32 %s94, 1
        %s723 = scalar_lea.sflag [#allocation3], %s722
        %s724 = sand.u32 %s94, 1
        %s725 = smul.addr %s724, 16
        %s726 = scalar_lea.vmem [#allocation2], %s725
        // Predicated region
        $region29: #{_lambda_.11} parent=27 // pred_check
          %p727 = pneg %p104
        $region30: #{_lambda_.11} parent=27 // pred_check_branch
          %729 = sbr.rel (%p727) target = $region32
        $region31: #{_lambda_.11} parent=27 // pred_region
          %s730 = smul.u32 2, %s21
          %732 = vsyncadd %s723, 0
          %s733 = smul.addr %s20, 2
          %s734 = sadd.s32 %s730, %s733
          %s735 = smul.addr %s734, 8
          %s736 = scalar_lea.hbm %s2, %s735
          %s737 = sshll.u32 %s726, 4
          %s738 = int_to_ptr.vmem [resolvable:$true] %s737
          %s739 = sshll.u32 %s736, 4
          %s740 = int_to_ptr.hbm [resolvable:$true] %s739
          %745 = dma.vmem_to_hbm [thread:$0]  %s738, 256, %s740, %s723, 128, 128, 8
        $region32: #{_lambda_.11} parent=27 // pred_fallthru
          _
      $region28: #{_lambda_.11} parent=5 // pred_fallthru
        _
      %p746 = scmp.le.s32.totalorder 2, %s11
      // Predicated region
      $region33: #{_lambda_.11} parent=5 // pred_check
        %p747 = pneg %p746
      $region34: #{_lambda_.11} parent=5 // pred_check_branch
        %749 = sbr.rel (%p747) target = $region36
      $region35: #{_lambda_.11} parent=5 // pred_region
        %s750 = ssub.s32 %s11, 2
        // Predicated region
        $region37: #{_lambda_.11} parent=35 // pred_check
          %p751 = pneg %p110
        $region38: #{_lambda_.11} parent=35 // pred_check_branch
          %753 = sbr.rel (%p751) target = $region40
        $region39: #{_lambda_.11} parent=35 // pred_region
          %s754 = sand.u32 %s95, 1
          %s755 = scalar_lea.sflag [#allocation3], %s754
          %s756 = sand.u32 %s95, 1
          %s757 = smul.addr %s756, 16
          %s758 = scalar_lea.vmem [#allocation2], %s757
          %760 = dma.done %s755, 256
        $region40: #{_lambda_.11} parent=35 // pred_fallthru
          _
      $region36: #{_lambda_.11} parent=5 // pred_fallthru
        _
    $region6: #{_lambda_.11} parent=1 // loop_footer
      %s15 = sadd.s32 1, %s11
    $region7: #{_lambda_.11} parent=1 // loop_footer_branch
      %10 = sbr.rel target = $region3
    $region8: #{_lambda_.11} parent=1 // loop_exit
      _
    %761 = vsyncpa [#allocation3], 1
    %s762 = scalar_lea.sflag [#allocation3], 1
    %763 = vsyncpa %s762, 1

// kernel: _lambda_.12
$region0: #{_lambda_.12}
  #allocation0 [shape = 'u32[]', space=smem, size = 0x4, offset = 0x4, fixed_abs, tag = 'smem constant byte address 0x4 - core index']
  #allocation1 [shape = 'u32[72,128]{1,0:T(1,128)}', space=vmem, size = 0x9000, scoped, tag = 'internal scratch']
  %s0 = inlined_call_operand.vmem [shape: bf16[2,8,8,8], index: 0, kind: input, shape index: {}]
  %s1 = inlined_call_operand.vmem [shape: bf16[2,8,8,12], index: 1, kind: input, shape index: {}]
  %s2 = inlined_call_operand.hbm [shape: f32[2,8,8], index: 2, kind: output, shape index: {}]
  %s3 = sld [smem:[#allocation0]]
  $region41: #{_lambda_.12} parent=0
    _
  %s5 = ssub.s32 1, %s3
  %s6 = scalar_select 0, %s5, %s3
  $region1: #{_lambda_.12} parent=0
    #allocation2 [shape = 'u8[8192]{0}', space=vmem, size = 0x2000, scoped, tag = 'output window, operand 0']
    #allocation3 [shape = 's32[2]{0}', space=sflag, size = 0x8, scoped, tag = 'scoped memory for _lambda_.12']
    %7 = vsyncpa [#allocation3], 0
    %s8 = scalar_lea.sflag [#allocation3], 1
    %9 = vsyncpa %s8, 0
    loop: start=0, step=1, limit=4
    $region2: #{_lambda_.12} parent=1 // loop_pre_header
      _
    $region3: #{_lambda_.12} parent=1 // loop_header
      %s11 = sphi 0, %s15
      %p12 = scmp.ge.s32.totalorder %s11, 4
      %s18 = sphi 0, %s30
      %s19 = sphi 0, %s26
      %s20 = sphi 0, %s18
      %s21 = sphi 0, %s19
      %s22 = sphi 0, %s20
      %s23 = sphi 0, %s21
      %s35 = sphi 0, %s37
      %s38 = sphi 0, %s35
      %s39 = sphi 0, %s38
      %s55 = sphi 0, %s39
      %s63 = sphi 0, %s65
      %s66 = sphi 0, %s63
      %s67 = sphi 0, %s66
      %s83 = sphi 0, %s67
      %s91 = sphi 0, %s93
      %s94 = sphi 0, %s91
      %s95 = sphi 0, %s94
      %s111 = sphi 0, %s95
    $region4: #{_lambda_.12} parent=1 // loop_header_branch
      %14 = sbr.rel (%p12) target = $region8
    $region5: #{_lambda_.12} parent=1 // loop_body
      %s16 = ssub.s32 %s11, 1
      %s17 = ssub.s32 %s11, 2
      %s24 = sadd.s32 1, %s19
      %p25 = scmp.ge.s32.totalorder %s24, 1
      %s26 = scalar_select %p25, 0, %s24
      %s27 = sadd.s32 1, %s18
      %s28 = scalar_select %p25, %s27, %s18
      %p29 = scmp.ge.s32.totalorder %s28, 2
      %s30 = scalar_select %p29, 0, %s28
      %s31 = ssub.s32 %s18, %s30
      %s32 = ssub.s32 %s19, %s26
      %s33 = sor.u32 %s31, %s32
      %p34 = scmp.eq.s32.totalorder %s33, 0
      %s36 = sadd.s32 %s35, 1
      %s37 = scalar_select %p34, %s35, %s36
      %p40 = pneg %p34
      %p41 = scmp.eq.s32.totalorder %s11, 1
      %p42 = por %p40, %p41
      %p43 = scmp.ne.s32.totalorder %s35, %s38
      %p44 = scmp.eq.s32.totalorder %s11, 0
      %p45 = por %p43, %p44
      %p46 = scmp.ne.s32.totalorder %s35, %s38
      %p47 = scmp.eq.s32.totalorder %s16, 1
      %p48 = por %p46, %p47
      %p49 = scmp.ne.s32.totalorder %s38, %s39
      %p50 = scmp.eq.s32.totalorder %s16, 0
      %p51 = por %p49, %p50
      %p52 = scmp.ne.s32.totalorder %s38, %s39
      %p53 = scmp.eq.s32.totalorder %s17, 1
      %p54 = por %p52, %p53
      %p56 = scmp.ne.s32.totalorder %s39, %s55
      %p57 = scmp.eq.s32.totalorder %s17, 0
      %p58 = por %p56, %p57
      %s59 = ssub.s32 %s18, %s30
      %s60 = ssub.s32 %s19, %s26
      %s61 = sor.u32 %s59, %s60
      %p62 = scmp.eq.s32.totalorder %s61, 0
      %s64 = sadd.s32 %s63, 1
      %s65 = scalar_select %p62, %s63, %s64
      %p68 = pneg %p62
      %p69 = scmp.eq.s32.totalorder %s11, 1
      %p70 = por %p68, %p69
      %p71 = scmp.ne.s32.totalorder %s63, %s66
      %p72 = scmp.eq.s32.totalorder %s11, 0
      %p73 = por %p71, %p72
      %p74 = scmp.ne.s32.totalorder %s63, %s66
      %p75 = scmp.eq.s32.totalorder %s16, 1
      %p76 = por %p74, %p75
      %p77 = scmp.ne.s32.totalorder %s66, %s67
      %p78 = scmp.eq.s32.totalorder %s16, 0
      %p79 = por %p77, %p78
      %p80 = scmp.ne.s32.totalorder %s66, %s67
      %p81 = scmp.eq.s32.totalorder %s17, 1
      %p82 = por %p80, %p81
      %p84 = scmp.ne.s32.totalorder %s67, %s83
      %p85 = scmp.eq.s32.totalorder %s17, 0
      %p86 = por %p84, %p85
      %s87 = ssub.s32 %s18, %s30
      %s88 = ssub.s32 %s19, %s26
      %s89 = sor.u32 %s87, %s88
      %p90 = scmp.eq.s32.totalorder %s89, 0
      %s92 = sadd.s32 %s91, 1
      %s93 = scalar_select %p90, %s91, %s92
      %p96 = pneg %p90
      %p97 = scmp.eq.s32.totalorder %s11, 1
      %p98 = por %p96, %p97
      %p99 = scmp.ne.s32.totalorder %s91, %s94
      %p100 = scmp.eq.s32.totalorder %s11, 0
      %p101 = por %p99, %p100
      %p102 = scmp.ne.s32.totalorder %s91, %s94
      %p103 = scmp.eq.s32.totalorder %s16, 1
      %p104 = por %p102, %p103
      %p105 = scmp.ne.s32.totalorder %s94, %s95
      %p106 = scmp.eq.s32.totalorder %s16, 0
      %p107 = por %p105, %p106
      %p108 = scmp.ne.s32.totalorder %s94, %s95
      %p109 = scmp.eq.s32.totalorder %s17, 1
      %p110 = por %p108, %p109
      %p112 = scmp.ne.s32.totalorder %s95, %s111
      %p113 = scmp.eq.s32.totalorder %s17, 0
      %p114 = por %p112, %p113
      %p115 = scmp.le.s32.totalorder 1, %s11
      %p116 = scmp.lt.s32.totalorder %s11, 3
      %p117 = pnand %p115, %p116
      %p118 = pneg %p117
      // Predicated region
      $region9: #{_lambda_.12} parent=5 // pred_check
        _
      $region10: #{_lambda_.12} parent=5 // pred_check_branch
        %120 = sbr.rel (%p117) target = $region12
      $region11: #{_lambda_.12} parent=5 // pred_region
        %s121 = ssub.s32 %s11, 1
      $region12: #{_lambda_.12} parent=5 // pred_fallthru
        _
      %p122 = scmp.lt.s32.totalorder %s11, 2
      // Predicated region
      $region13: #{_lambda_.12} parent=5 // pred_check
        %p123 = pneg %p122
      $region14: #{_lambda_.12} parent=5 // pred_check_branch
        %125 = sbr.rel (%p123) target = $region16
      $region15: #{_lambda_.12} parent=5 // pred_region
        // Predicated region
        $region17: #{_lambda_.12} parent=15 // pred_check
          %p126 = pneg %p45
        $region18: #{_lambda_.12} parent=15 // pred_check_branch
          %128 = sbr.rel (%p126) target = $region20
        $region19: #{_lambda_.12} parent=15 // pred_region
          %p129 = scmp.lt.s32.totalorder %s18, 1
          %s130 = scalar_select %p129, %s18, 1
          %p131 = scmp.lt.s32.totalorder %s19, 0
          %s132 = scalar_select %p131, %s19, 0
          %s133 = smul.addr %s130, 8
          %s134 = sadd.s32 %s132, %s133
          %s135 = smul.addr %s134, 4
          %s136 = scalar_lea.vmem %s0, %s135
        $region20: #{_lambda_.12} parent=15 // pred_fallthru
          _
        // Predicated region
        $region21: #{_lambda_.12} parent=15 // pred_check
          %p137 = pneg %p73
        $region22: #{_lambda_.12} parent=15 // pred_check_branch
          %139 = sbr.rel (%p137) target = $region24
        $region23: #{_lambda_.12} parent=15 // pred_region
          %p140 = scmp.lt.s32.totalorder %s18, 1
          %s141 = scalar_select %p140, %s18, 1
          %p142 = scmp.lt.s32.totalorder %s19, 0
          %s143 = scalar_select %p142, %s19, 0
          %s144 = smul.addr %s141, 8
          %s145 = sadd.s32 %s143, %s144
          %s146 = smul.addr %s145, 4
          %s147 = scalar_lea.vmem %s1, %s146
        $region24: #{_lambda_.12} parent=15 // pred_fallthru
          _
      $region16: #{_lambda_.12} parent=5 // pred_fallthru
        _
      %p148 = scmp.le.s32.totalorder 1, %s11
      %p149 = scmp.lt.s32.totalorder %s11, 3
      %p150 = pnand %p148, %p149
      %p151 = pneg %p150
      // Predicated region
      $region25: #{_lambda_.12} parent=5 // pred_check
        _
      $region26: #{_lambda_.12} parent=5 // pred_check_branch
        %153 = sbr.rel (%p150) target = $region28
      $region27: #{_lambda_.12} parent=5 // pred_region
        %s154 = ssub.s32 %s11, 1
        %p155 = scmp.lt.s32.totalorder %s20, 1
        %s156 = scalar_select %p155, %s20, 1
        %p157 = scmp.lt.s32.totalorder %s21, 0
        %s158 = scalar_select %p157, %s21, 0
        %s159 = smul.addr %s156, 8
        %s160 = sadd.s32 %s158, %s159
        %s161 = smul.addr %s160, 4
        %s162 = scalar_lea.vmem %s0, %s161
        %p163 = pneg %p51
        %p164 = pneg %p48
        %p165 = scmp.lt.s32.totalorder %s20, 1
        %s166 = scalar_select %p165, %s20, 1
        %p167 = scmp.lt.s32.totalorder %s21, 0
        %s168 = scalar_select %p167, %s21, 0
        %s169 = smul.addr %s166, 8
        %s170 = sadd.s32 %s168, %s169
        %s171 = smul.addr %s170, 4
        %s172 = scalar_lea.vmem %s1, %s171
        %p173 = pneg %p79
        %p174 = pneg %p76
        %p175 = pneg %p107
        %p176 = pneg %p104
        %s177 = sand.u32 %s94, 1
        %s178 = scalar_lea.sflag [#allocation3], %s177
        %s179 = sand.u32 %s94, 1
        %s180 = smul.addr %s179, 8
        %s181 = scalar_lea.vmem [#allocation2], %s180
        %p182 = scmp.lt.s32.totalorder %s20, 1
        %s183 = scalar_select %p182, %s20, 1
        %p184 = scmp.lt.s32.totalorder %s21, 0
        %s185 = scalar_select %p184, %s21, 0
        %s186 = smul.addr %s183, 8
        %s187 = sadd.s32 %s185, %s186
        %s188 = smul.addr %s187, 4
        %s189 = scalar_lea.vmem %s0, %s188
        %p190 = scmp.lt.s32.totalorder %s20, 1
        %s191 = scalar_select %p190, %s20, 1
        %p192 = scmp.lt.s32.totalorder %s21, 0
        %s193 = scalar_select %p192, %s21, 0
        %s194 = smul.addr %s191, 8
        %s195 = sadd.s32 %s193, %s194
        %s196 = smul.addr %s195, 4
        %s197 = scalar_lea.vmem %s1, %s196
        %v198 = vld [vmem:[%s189] sm:$0xf]
        %v199 = vld [vmem:[%s189 + $0x4] sm:$0xf]
        %v200 = vld [vmem:[%s189 + $0x8] sm:$0xf]
        %v201 = vld [vmem:[%s189 + $0xc] sm:$0xf]
        %v202 = vld [vmem:[%s189 + $0x10] sm:$0xf]
        %v203 = vld [vmem:[%s189 + $0x14] sm:$0xf]
        %v204 = vld [vmem:[%s189 + $0x18] sm:$0xf]
        %v205 = vld [vmem:[%s189 + $0x1c] sm:$0xf]
        %v206 = vunpack.c.l.bf16 %v198
        %v207 = vunpack.c.l.bf16 %v199
        %v208 = vunpack.c.l.bf16 %v200
        %v209 = vunpack.c.l.bf16 %v201
        %v210 = vunpack.c.l.bf16 %v202
        %v211 = vunpack.c.l.bf16 %v203
        %v212 = vunpack.c.l.bf16 %v204
        %v213 = vunpack.c.l.bf16 %v205
        %v214 = vld [vmem:[%s197] sm:$0xf]
        %v215 = vld [vmem:[%s197 + $0x4] sm:$0xf]
        %v216 = vld [vmem:[%s197 + $0x8] sm:$0xf]
        %v217 = vld [vmem:[%s197 + $0xc] sm:$0xf]
        %v218 = vld [vmem:[%s197 + $0x10] sm:$0xf]
        %v219 = vld [vmem:[%s197 + $0x14] sm:$0xf]
        %v220 = vld [vmem:[%s197 + $0x18] sm:$0xf]
        %v221 = vld [vmem:[%s197 + $0x1c] sm:$0xf]
        %v222 = vunpack.c.l.bf16 %v214
        %v223 = vunpack.c.l.bf16 %v215
        %v224 = vunpack.c.l.bf16 %v216
        %v225 = vunpack.c.l.bf16 %v217
        %v226 = vunpack.c.l.bf16 %v218
        %v227 = vunpack.c.l.bf16 %v219
        %v228 = vunpack.c.l.bf16 %v220
        %v229 = vunpack.c.l.bf16 %v221
        %238 = vrot.lane.b32.xlu0 %v222, 124
        %v239 = vpop.permute.xlu0 %238
        %240 = vrot.lane.b32.xlu0 %v223, 124
        %v241 = vpop.permute.xlu0 %240
        %242 = vrot.lane.b32.xlu0 %v224, 124
        %v243 = vpop.permute.xlu0 %242
        %244 = vrot.lane.b32.xlu0 %v225, 124
        %v245 = vpop.permute.xlu0 %244
        %246 = vrot.lane.b32.xlu0 %v226, 124
        %v247 = vpop.permute.xlu0 %246
        %248 = vrot.lane.b32.xlu0 %v227, 124
        %v249 = vpop.permute.xlu0 %248
        %250 = vrot.lane.b32.xlu0 %v228, 124
        %v251 = vpop.permute.xlu0 %250
        %252 = vrot.lane.b32.xlu0 %v229, 124
        %v253 = vpop.permute.xlu0 %252
        %v262 = vmul.f32 %v206, %v239
        %v263 = vmul.f32 %v207, %v241
        %v264 = vmul.f32 %v208, %v243
        %v265 = vmul.f32 %v209, %v245
        %v266 = vmul.f32 %v210, %v247
        %v267 = vmul.f32 %v211, %v249
        %v268 = vmul.f32 %v212, %v251
        %v269 = vmul.f32 %v213, %v253
        %vm270 = vcmask 64512
        %v271 = vsel %vm270, %v262, 0.0
        %v272 = vsel %vm270, %v263, 0.0
        %v273 = vadd.f32 %v271, %v272
        %v274 = vsel %vm270, %v264, 0.0
        %v275 = vadd.f32 %v273, %v274
        %v276 = vsel %vm270, %v265, 0.0
        %v277 = vadd.f32 %v275, %v276
        %v278 = vsel %vm270, %v266, 0.0
        %v279 = vadd.f32 %v277, %v278
        %v280 = vsel %vm270, %v267, 0.0
        %v281 = vadd.f32 %v279, %v280
        %v282 = vsel %vm270, %v268, 0.0
        %v283 = vadd.f32 %v281, %v282
        %v284 = vsel %vm270, %v269, 0.0
        %v285 = vadd.f32 %v283, %v284
        %v286 = vmul.f32 %v285, 0.125
        %v287 = vmax.f32 %v286, -1e+30
        %v288 = vsub.f32 -1e+30, %v287
        %v289 = vmul.f32 %v288, 1.442695
        %v290 = vpow.pop %v289
        %v291 = vsub.f32 %v286, %v287
        %v292 = vmul.f32 %v291, 1.442695
        %v293 = vpow.pop %v292
        %v294 = vmul.f32 %v290, 0.0
        %v295 = vadd.f32 %v294, %v293
        %v296 = vmul.f32 %v293, 0.0
        %v297 = vadd.f32 %v294, %v296
        %298 = vrot.lane.b32.xlu0 %v222, 125
        %v299 = vpop.permute.xlu0 %298
        %300 = vrot.lane.b32.xlu0 %v223, 125
        %v301 = vpop.permute.xlu0 %300
        %302 = vrot.lane.b32.xlu0 %v224, 125
        %v303 = vpop.permute.xlu0 %302
        %304 = vrot.lane.b32.xlu0 %v225, 125
        %v305 = vpop.permute.xlu0 %304
        %306 = vrot.lane.b32.xlu0 %v226, 125
        %v307 = vpop.permute.xlu0 %306
        %308 = vrot.lane.b32.xlu0 %v227, 125
        %v309 = vpop.permute.xlu0 %308
        %310 = vrot.lane.b32.xlu0 %v228, 125
        %v311 = vpop.permute.xlu0 %310
        %312 = vrot.lane.b32.xlu0 %v229, 125
        %v313 = vpop.permute.xlu0 %312
        %v322 = vmul.f32 %v206, %v299
        %v323 = vmul.f32 %v207, %v301
        %v324 = vmul.f32 %v208, %v303
        %v325 = vmul.f32 %v209, %v305
        %v326 = vmul.f32 %v210, %v307
        %v327 = vmul.f32 %v211, %v309
        %v328 = vmul.f32 %v212, %v311
        %v329 = vmul.f32 %v213, %v313
        %v330 = vsel %vm270, %v322, 0.0
        %v331 = vsel %vm270, %v323, 0.0
        %v332 = vadd.f32 %v330, %v331
        %v333 = vsel %vm270, %v324, 0.0
        %v334 = vadd.f32 %v332, %v333
        %v335 = vsel %vm270, %v325, 0.0
        %v336 = vadd.f32 %v334, %v335
        %v337 = vsel %vm270, %v326, 0.0
        %v338 = vadd.f32 %v336, %v337
        %v339 = vsel %vm270, %v327, 0.0
        %v340 = vadd.f32 %v338, %v339
        %v341 = vsel %vm270, %v328, 0.0
        %v342 = vadd.f32 %v340, %v341
        %v343 = vsel %vm270, %v329, 0.0
        %v344 = vadd.f32 %v342, %v343
        %v345 = vmul.f32 %v344, 0.125
        %v346 = vmax.f32 %v287, %v345
        %v347 = vsub.f32 %v287, %v346
        %v348 = vmul.f32 %v347, 1.442695
        %v349 = vpow.pop %v348
        %v350 = vsub.f32 %v345, %v346
        %v351 = vmul.f32 %v350, 1.442695
        %v352 = vpow.pop %v351
        %v353 = vmul.f32 %v295, %v349
        %v354 = vadd.f32 %v353, %v352
        %v355 = vmul.f32 %v297, %v349
        %v356 = vadd.f32 %v355, %v352
        %357 = vrot.lane.b32.xlu0 %v222, 126
        %v358 = vpop.permute.xlu0 %357
        %359 = vrot.lane.b32.xlu0 %v223, 126
        %v360 = vpop.permute.xlu0 %359
        %361 = vrot.lane.b32.xlu0 %v224, 126
        %v362 = vpop.permute.xlu0 %361
        %363 = vrot.lane.b32.xlu0 %v225, 126
        %v364 = vpop.permute.xlu0 %363
        %365 = vrot.lane.b32.xlu0 %v226, 126
        %v366 = vpop.permute.xlu0 %365
        %367 = vrot.lane.b32.xlu0 %v227, 126
        %v368 = vpop.permute.xlu0 %367
        %369 = vrot.lane.b32.xlu0 %v228, 126
        %v370 = vpop.permute.xlu0 %369
        %371 = vrot.lane.b32.xlu0 %v229, 126
        %v372 = vpop.permute.xlu0 %371
        %v381 = vmul.f32 %v206, %v358
        %v382 = vmul.f32 %v207, %v360
        %v383 = vmul.f32 %v208, %v362
        %v384 = vmul.f32 %v209, %v364
        %v385 = vmul.f32 %v210, %v366
        %v386 = vmul.f32 %v211, %v368
        %v387 = vmul.f32 %v212, %v370
        %v388 = vmul.f32 %v213, %v372
        %v389 = vsel %vm270, %v381, 0.0
        %v390 = vsel %vm270, %v382, 0.0
        %v391 = vadd.f32 %v389, %v390
        %v392 = vsel %vm270, %v383, 0.0
        %v393 = vadd.f32 %v391, %v392
        %v394 = vsel %vm270, %v384, 0.0
        %v395 = vadd.f32 %v393, %v394
        %v396 = vsel %vm270, %v385, 0.0
        %v397 = vadd.f32 %v395, %v396
        %v398 = vsel %vm270, %v386, 0.0
        %v399 = vadd.f32 %v397, %v398
        %v400 = vsel %vm270, %v387, 0.0
        %v401 = vadd.f32 %v399, %v400
        %v402 = vsel %vm270, %v388, 0.0
        %v403 = vadd.f32 %v401, %v402
        %v404 = vmul.f32 %v403, 0.125
        %v405 = vmax.f32 %v346, %v404
        %v406 = vsub.f32 %v346, %v405
        %v407 = vmul.f32 %v406, 1.442695
        %v408 = vpow.pop %v407
        %v409 = vsub.f32 %v404, %v405
        %v410 = vmul.f32 %v409, 1.442695
        %v411 = vpow.pop %v410
        %v412 = vmul.f32 %v354, %v408
        %v413 = vadd.f32 %v412, %v411
        %v414 = vmul.f32 %v356, %v408
        %v415 = vmul.f32 %v411, 2.0
        %v416 = vadd.f32 %v414, %v415
        %417 = vrot.lane.b32.xlu0 %v222, 127
        %v418 = vpop.permute.xlu0 %417
        %419 = vrot.lane.b32.xlu0 %v223, 127
        %v420 = vpop.permute.xlu0 %419
        %421 = vrot.lane.b32.xlu0 %v224, 127
        %v422 = vpop.permute.xlu0 %421
        %423 = vrot.lane.b32.xlu0 %v225, 127
        %v424 = vpop.permute.xlu0 %423
        %425 = vrot.lane.b32.xlu0 %v226, 127
        %v426 = vpop.permute.xlu0 %425
        %427 = vrot.lane.b32.xlu0 %v227, 127
        %v428 = vpop.permute.xlu0 %427
        %429 = vrot.lane.b32.xlu0 %v228, 127
        %v430 = vpop.permute.xlu0 %429
        %431 = vrot.lane.b32.xlu0 %v229, 127
        %v432 = vpop.permute.xlu0 %431
        %v441 = vmul.f32 %v206, %v418
        %v442 = vmul.f32 %v207, %v420
        %v443 = vmul.f32 %v208, %v422
        %v444 = vmul.f32 %v209, %v424
        %v445 = vmul.f32 %v210, %v426
        %v446 = vmul.f32 %v211, %v428
        %v447 = vmul.f32 %v212, %v430
        %v448 = vmul.f32 %v213, %v432
        %v449 = vsel %vm270, %v441, 0.0
        %v450 = vsel %vm270, %v442, 0.0
        %v451 = vadd.f32 %v449, %v450
        %v452 = vsel %vm270, %v443, 0.0
        %v453 = vadd.f32 %v451, %v452
        %v454 = vsel %vm270, %v444, 0.0
        %v455 = vadd.f32 %v453, %v454
        %v456 = vsel %vm270, %v445, 0.0
        %v457 = vadd.f32 %v455, %v456
        %v458 = vsel %vm270, %v446, 0.0
        %v459 = vadd.f32 %v457, %v458
        %v460 = vsel %vm270, %v447, 0.0
        %v461 = vadd.f32 %v459, %v460
        %v462 = vsel %vm270, %v448, 0.0
        %v463 = vadd.f32 %v461, %v462
        %v464 = vmul.f32 %v463, 0.125
        %v465 = vmax.f32 %v405, %v464
        %v466 = vsub.f32 %v405, %v465
        %v467 = vmul.f32 %v466, 1.442695
        %v468 = vpow.pop %v467
        %v469 = vsub.f32 %v464, %v465
        %v470 = vmul.f32 %v469, 1.442695
        %v471 = vpow.pop %v470
        %v472 = vmul.f32 %v413, %v468
        %v473 = vadd.f32 %v472, %v471
        %v474 = vmul.f32 %v416, %v468
        %v475 = vmul.f32 %v471, 3.0
        %v476 = vadd.f32 %v474, %v475
        %v477 = vrcp.pop %v473
        %v478 = vmul.f32 %v476, %v477
        %479 = vst.msk [vmem:[%s181] sm:$0xff] %vm270, %v478
        %s480 = sand.u32 %s94, 1
        %s481 = scalar_lea.sflag [#allocation3], %s480
        %s482 = sand.u32 %s94, 1
        %s483 = smul.addr %s482, 8
        %s484 = scalar_lea.vmem [#allocation2], %s483
        // Predicated region
        $region29: #{_lambda_.12} parent=27 // pred_check
          %p485 = pneg %p104
        $region30: #{_lambda_.12} parent=27 // pred_check_branch
          %487 = sbr.rel (%p485) target = $region32
        $region31: #{_lambda_.12} parent=27 // pred_region
          %489 = vsyncadd %s481, 0
          %s490 = sadd.s32 %s21, %s20
          %s491 = smul.addr %s490, 8
          %s492 = scalar_lea.hbm %s2, %s491
          %s494 = sshll.u32 %s484, 4
          %s495 = int_to_ptr.vmem [resolvable:$true] %s494
          %s496 = sshll.u32 %s492, 4
          %s497 = int_to_ptr.hbm [resolvable:$true] %s496
          %499 = dma.vmem_to_hbm [thread:$0]  %s495, 128, %s497, %s481
        $region32: #{_lambda_.12} parent=27 // pred_fallthru
          _
      $region28: #{_lambda_.12} parent=5 // pred_fallthru
        _
      %p500 = scmp.le.s32.totalorder 2, %s11
      // Predicated region
      $region33: #{_lambda_.12} parent=5 // pred_check
        %p501 = pneg %p500
      $region34: #{_lambda_.12} parent=5 // pred_check_branch
        %503 = sbr.rel (%p501) target = $region36
      $region35: #{_lambda_.12} parent=5 // pred_region
        %s504 = ssub.s32 %s11, 2
        // Predicated region
        $region37: #{_lambda_.12} parent=35 // pred_check
          %p505 = pneg %p110
        $region38: #{_lambda_.12} parent=35 // pred_check_branch
          %507 = sbr.rel (%p505) target = $region40
        $region39: #{_lambda_.12} parent=35 // pred_region
          %s508 = sand.u32 %s95, 1
          %s509 = scalar_lea.sflag [#allocation3], %s508
          %s510 = sand.u32 %s95, 1
          %s511 = smul.addr %s510, 8
          %s512 = scalar_lea.vmem [#allocation2], %s511
          %514 = dma.done %s509, 128
        $region40: #{_lambda_.12} parent=35 // pred_fallthru
          _
      $region36: #{_lambda_.12} parent=5 // pred_fallthru
        _
    $region6: #{_lambda_.12} parent=1 // loop_footer
      %s15 = sadd.s32 1, %s11
    $region7: #{_lambda_.12} parent=1 // loop_footer_branch
      %10 = sbr.rel target = $region3
    $region8: #{_lambda_.12} parent=1 // loop_exit
      _
    %515 = vsyncpa [#allocation3], 1
    %s516 = scalar_lea.sflag [#allocation3], 1
    %517 = vsyncpa %s516, 1

// kernel: _lambda_.7
$region0: #{_lambda_.7}
  #allocation0 [shape = 'u32[]', space=smem, size = 0x4, offset = 0x4, fixed_abs, tag = 'smem constant byte address 0x4 - core index']
  #allocation1 [shape = 'u32[72,128]{1,0:T(1,128)}', space=vmem, size = 0x9000, scoped, tag = 'internal scratch']
  %s0 = inlined_call_operand.vmem [shape: bf16[2,27,64], index: 0, kind: input, shape index: {}]
  %s1 = inlined_call_operand.vmem [shape: bf16[8,27], index: 1, kind: input, shape index: {}]
  %s2 = inlined_call_operand.vmem [shape: f32[8,1], index: 2, kind: input, shape index: {}]
  %s3 = inlined_call_operand.vmem [shape: bf16[2,8,64], index: 3, kind: output, shape index: {}]
  %s4 = sld [smem:[#allocation0]]
  $region45: #{_lambda_.7} parent=0
    _
  %s6 = ssub.s32 1, %s4
  %s7 = scalar_select 0, %s6, %s4
  loop: start=0, step=1, limit=4
  $region2: #{_lambda_.7} parent=0 // loop_pre_header
    _
  $region3: #{_lambda_.7} parent=0 // loop_header
    %s9 = sphi 0, %s13
    %p10 = scmp.ge.s32.totalorder %s9, 4
    %s16 = sphi 0, %s28
    %s17 = sphi 0, %s24
    %s18 = sphi 0, %s16
    %s19 = sphi 0, %s17
    %s20 = sphi 0, %s18
    %s21 = sphi 0, %s19
    %s33 = sphi 0, %s35
    %s36 = sphi 0, %s33
    %s37 = sphi 0, %s36
    %s53 = sphi 0, %s37
    %s57 = sphi 0, %s57
    %s59 = sphi 0, %s57
    %s60 = sphi 0, %s59
    %s74 = sphi 0, %s60
    %s78 = sphi 0, %s78
    %s80 = sphi 0, %s78
    %s81 = sphi 0, %s80
    %s95 = sphi 0, %s81
    %s103 = sphi 0, %s105
    %s106 = sphi 0, %s103
    %s107 = sphi 0, %s106
    %s123 = sphi 0, %s107
  $region4: #{_lambda_.7} parent=0 // loop_header_branch
    %12 = sbr.rel (%p10) target = $region8
  $region5: #{_lambda_.7} parent=0 // loop_body
    %s14 = ssub.s32 %s9, 1
    %s15 = ssub.s32 %s9, 2
    %s22 = sadd.s32 1, %s17
    %p23 = scmp.ge.s32.totalorder %s22, 1
    %s24 = scalar_select %p23, 0, %s22
    %s25 = sadd.s32 1, %s16
    %s26 = scalar_select %p23, %s25, %s16
    %p27 = scmp.ge.s32.totalorder %s26, 2
    %s28 = scalar_select %p27, 0, %s26
    %s29 = ssub.s32 %s16, %s28
    %s30 = ssub.s32 %s17, %s24
    %s31 = sor.u32 %s29, %s30
    %p32 = scmp.eq.s32.totalorder %s31, 0
    %s34 = sadd.s32 %s33, 1
    %s35 = scalar_select %p32, %s33, %s34
    %p38 = pneg %p32
    %p39 = scmp.eq.s32.totalorder %s9, 1
    %p40 = por %p38, %p39
    %p41 = scmp.ne.s32.totalorder %s33, %s36
    %p42 = scmp.eq.s32.totalorder %s9, 0
    %p43 = por %p41, %p42
    %p44 = scmp.ne.s32.totalorder %s33, %s36
    %p45 = scmp.eq.s32.totalorder %s14, 1
    %p46 = por %p44, %p45
    %p47 = scmp.ne.s32.totalorder %s36, %s37
    %p48 = scmp.eq.s32.totalorder %s14, 0
    %p49 = por %p47, %p48
    %p50 = scmp.ne.s32.totalorder %s36, %s37
    %p51 = scmp.eq.s32.totalorder %s15, 1
    %p52 = por %p50, %p51
    %p54 = scmp.ne.s32.totalorder %s37, %s53
    %p55 = scmp.eq.s32.totalorder %s15, 0
    %p56 = por %p54, %p55
    %s58 = sadd.s32 %s57, 1
    %p61 = scmp.eq.s32.totalorder %s9, 1
    %p62 = scmp.ne.s32.totalorder %s57, %s59
    %p63 = scmp.eq.s32.totalorder %s9, 0
    %p64 = por %p62, %p63
    %p65 = scmp.ne.s32.totalorder %s57, %s59
    %p66 = scmp.eq.s32.totalorder %s14, 1
    %p67 = por %p65, %p66
    %p68 = scmp.ne.s32.totalorder %s59, %s60
    %p69 = scmp.eq.s32.totalorder %s14, 0
    %p70 = por %p68, %p69
    %p71 = scmp.ne.s32.totalorder %s59, %s60
    %p72 = scmp.eq.s32.totalorder %s15, 1
    %p73 = por %p71, %p72
    %p75 = scmp.ne.s32.totalorder %s60, %s74
    %p76 = scmp.eq.s32.totalorder %s15, 0
    %p77 = por %p75, %p76
    %s79 = sadd.s32 %s78, 1
    %p82 = scmp.eq.s32.totalorder %s9, 1
    %p83 = scmp.ne.s32.totalorder %s78, %s80
    %p84 = scmp.eq.s32.totalorder %s9, 0
    %p85 = por %p83, %p84
    %p86 = scmp.ne.s32.totalorder %s78, %s80
    %p87 = scmp.eq.s32.totalorder %s14, 1
    %p88 = por %p86, %p87
    %p89 = scmp.ne.s32.totalorder %s80, %s81
    %p90 = scmp.eq.s32.totalorder %s14, 0
    %p91 = por %p89, %p90
    %p92 = scmp.ne.s32.totalorder %s80, %s81
    %p93 = scmp.eq.s32.totalorder %s15, 1
    %p94 = por %p92, %p93
    %p96 = scmp.ne.s32.totalorder %s81, %s95
    %p97 = scmp.eq.s32.totalorder %s15, 0
    %p98 = por %p96, %p97
    %s99 = ssub.s32 %s16, %s28
    %s100 = ssub.s32 %s17, %s24
    %s101 = sor.u32 %s99, %s100
    %p102 = scmp.eq.s32.totalorder %s101, 0
    %s104 = sadd.s32 %s103, 1
    %s105 = scalar_select %p102, %s103, %s104
    %p108 = pneg %p102
    %p109 = scmp.eq.s32.totalorder %s9, 1
    %p110 = por %p108, %p109
    %p111 = scmp.ne.s32.totalorder %s103, %s106
    %p112 = scmp.eq.s32.totalorder %s9, 0
    %p113 = por %p111, %p112
    %p114 = scmp.ne.s32.totalorder %s103, %s106
    %p115 = scmp.eq.s32.totalorder %s14, 1
    %p116 = por %p114, %p115
    %p117 = scmp.ne.s32.totalorder %s106, %s107
    %p118 = scmp.eq.s32.totalorder %s14, 0
    %p119 = por %p117, %p118
    %p120 = scmp.ne.s32.totalorder %s106, %s107
    %p121 = scmp.eq.s32.totalorder %s15, 1
    %p122 = por %p120, %p121
    %p124 = scmp.ne.s32.totalorder %s107, %s123
    %p125 = scmp.eq.s32.totalorder %s15, 0
    %p126 = por %p124, %p125
    %p127 = scmp.le.s32.totalorder 1, %s9
    %p128 = scmp.lt.s32.totalorder %s9, 3
    %p129 = pnand %p127, %p128
    %p130 = pneg %p129
    // Predicated region
    $region9: #{_lambda_.7} parent=5 // pred_check
      _
    $region10: #{_lambda_.7} parent=5 // pred_check_branch
      %132 = sbr.rel (%p129) target = $region12
    $region11: #{_lambda_.7} parent=5 // pred_region
      %s133 = ssub.s32 %s9, 1
      // Predicated region
      $region13: #{_lambda_.7} parent=11 // pred_check
        %p134 = pneg %p70
      $region14: #{_lambda_.7} parent=11 // pred_check_branch
        %136 = sbr.rel (%p134) target = $region16
      $region15: #{_lambda_.7} parent=11 // pred_region
        _
      $region16: #{_lambda_.7} parent=11 // pred_fallthru
        _
      // Predicated region
      $region17: #{_lambda_.7} parent=11 // pred_check
        %p137 = pneg %p91
      $region18: #{_lambda_.7} parent=11 // pred_check_branch
        %139 = sbr.rel (%p137) target = $region20
      $region19: #{_lambda_.7} parent=11 // pred_region
        _
      $region20: #{_lambda_.7} parent=11 // pred_fallthru
        _
    $region12: #{_lambda_.7} parent=5 // pred_fallthru
      _
    %p140 = scmp.lt.s32.totalorder %s9, 2
    // Predicated region
    $region21: #{_lambda_.7} parent=5 // pred_check
      %p141 = pneg %p140
    $region22: #{_lambda_.7} parent=5 // pred_check_branch
      %143 = sbr.rel (%p141) target = $region24
    $region23: #{_lambda_.7} parent=5 // pred_region
      // Predicated region
      $region25: #{_lambda_.7} parent=23 // pred_check
        %p144 = pneg %p43
      $region26: #{_lambda_.7} parent=23 // pred_check_branch
        %146 = sbr.rel (%p144) target = $region28
      $region27: #{_lambda_.7} parent=23 // pred_region
        %p147 = scmp.lt.s32.totalorder %s16, 1
        %s148 = scalar_select %p147, %s16, 1
        %p149 = scmp.lt.s32.totalorder %s17, 0
        %s150 = scalar_select %p149, %s17, 0
        %s151 = smul.addr %s148, 4
        %s152 = sadd.s32 %s150, %s151
        %s153 = smul.addr %s152, 4
        %s154 = scalar_lea.vmem %s0, %s153
      $region28: #{_lambda_.7} parent=23 // pred_fallthru
        _
    $region24: #{_lambda_.7} parent=5 // pred_fallthru
      _
    %p155 = scmp.le.s32.totalorder 1, %s9
    %p156 = scmp.lt.s32.totalorder %s9, 3
    %p157 = pnand %p155, %p156
    %p158 = pneg %p157
    // Predicated region
    $region29: #{_lambda_.7} parent=5 // pred_check
      _
    $region30: #{_lambda_.7} parent=5 // pred_check_branch
      %160 = sbr.rel (%p157) target = $region32
    $region31: #{_lambda_.7} parent=5 // pred_region
      %s161 = ssub.s32 %s9, 1
      %p162 = scmp.lt.s32.totalorder %s18, 1
      %s163 = scalar_select %p162, %s18, 1
      %p164 = scmp.lt.s32.totalorder %s19, 0
      %s165 = scalar_select %p164, %s19, 0
      %s166 = smul.addr %s163, 4
      %s167 = sadd.s32 %s165, %s166
      %s168 = smul.addr %s167, 4
      %s169 = scalar_lea.vmem %s0, %s168
      %p170 = pneg %p49
      %p171 = pneg %p46
      %p172 = pneg %p70
      %p173 = pneg %p67
      %p174 = pneg %p91
      %p175 = pneg %p88
      %p176 = pneg %p119
      %p177 = pneg %p116
      %p178 = scmp.lt.s32.totalorder %s18, 1
      %s179 = scalar_select %p178, %s18, 1
      %p180 = scmp.lt.s32.totalorder %s19, 0
      %s181 = scalar_select %p180, %s19, 0
      %s182 = sadd.s32 %s181, %s179
      %s183 = smul.addr %s182, 4
      %s184 = scalar_lea.vmem %s3, %s183
      %p185 = scmp.lt.s32.totalorder %s18, 1
      %s186 = scalar_select %p185, %s18, 1
      %p187 = scmp.lt.s32.totalorder %s19, 0
      %s188 = scalar_select %p187, %s19, 0
      %s189 = smul.addr %s186, 4
      %s190 = sadd.s32 %s188, %s189
      %s191 = smul.addr %s190, 4
      %s192 = scalar_lea.vmem %s0, %s191
      %p193 = scmp.lt.s32.totalorder %s18, 1
      %s194 = scalar_select %p193, %s18, 1
      %p195 = scmp.lt.s32.totalorder %s19, 0
      %s196 = scalar_select %p195, %s19, 0
      %s197 = sadd.s32 %s196, %s194
      %s198 = smul.addr %s197, 4
      %s199 = scalar_lea.vmem %s3, %s198
      %v201 = vld [vmem:[%s1] sm:$0xf]
      %v202 = vld [vmem:[%s192] sm:$0xf]
      %v203 = vld [vmem:[%s192 + $0x4] sm:$0xf]
      %v204 = vld [vmem:[%s192 + $0x8] sm:$0xf]
      %v205 = vld [vmem:[%s192 + $0xc] sm:$0x3]
      %v206 = vld [vmem:[%s2] sm:$0xff]
      %208 = vset.pattern.permute.xlu0 0
      %209 = vperm.xlu0 %208, %v206
      %v210 = vpop.permute.xlu0 %209
      %v216 = vunpack.c.l.b16 %v202
      %v217 = vunpack.c.l.b16 %v203
      %v218 = vunpack.c.l.b16 %v204
      %v219 = vunpack.c.l.b16 %v205
      %v220 = vpack.c.b16 %v217, %v216
      %v221 = vpack.c.b16 %v219, %v218
      %vm223 = vcmask 220160
      %v225 = vsel %vm223, %v201, 0
      %vm227 = vcmask 1044480
      %vm228 = vcmask 1045504
      %v229 = vsel %vm227, 4294967295, 65535
      %v230 = vsel %vm228, %v229, 0
      %v232 = vand.u32 %v221, %v230
      %234 = vmatpush.bf16.msra.mxu0 0
      %235 = vmatpush.bf16.msra.mxu0 0
      %236 = vmatpush.bf16.msra.mxu0 0
      %237 = vmatpush.bf16.msra.mxu0 0
      %238 = vmatpush.bf16.msra.mxu0 0
      %239 = vmatpush.bf16.msra.mxu0 0
      %240 = vmatpush.bf16.msra.mxu0 %v232
      %241 = vmatpush.bf16.msra.mxu0 %v220
      %242 = vmatmul.bf16.gmra.mxu0 %v225
      %v243 = vpop.f32.mrf.mxu0
      %v244 = vadd.f32 %v210, %v243
      %v245 = vpop.f32.mrf.mxu0
      %246 = vdwg.mxu0
      %v247 = vmax.f32 %v244, 0.0
      %v248 = vpack.c.bf16 %v247, %v247
      %vm249 = vcmask 519168
      %250 = vst.msk [vmem:[%s199] sm:$0xf] %vm249, %v248
      %p251 = scmp.lt.s32.totalorder %s18, 1
      %s252 = scalar_select %p251, %s18, 1
      %p253 = scmp.lt.s32.totalorder %s19, 0
      %s254 = scalar_select %p253, %s19, 0
      %s255 = sadd.s32 %s254, %s252
      %s256 = smul.addr %s255, 4
      %s257 = scalar_lea.vmem %s3, %s256
      // Predicated region
      $region33: #{_lambda_.7} parent=31 // pred_check
        %p258 = pneg %p116
      $region34: #{_lambda_.7} parent=31 // pred_check_branch
        %260 = sbr.rel (%p258) target = $region36
      $region35: #{_lambda_.7} parent=31 // pred_region
        _
      $region36: #{_lambda_.7} parent=31 // pred_fallthru
        _
    $region32: #{_lambda_.7} parent=5 // pred_fallthru
      _
    %p261 = scmp.le.s32.totalorder 2, %s9
    // Predicated region
    $region37: #{_lambda_.7} parent=5 // pred_check
      %p262 = pneg %p261
    $region38: #{_lambda_.7} parent=5 // pred_check_branch
      %264 = sbr.rel (%p262) target = $region40
    $region39: #{_lambda_.7} parent=5 // pred_region
      %s265 = ssub.s32 %s9, 2
      // Predicated region
      $region41: #{_lambda_.7} parent=39 // pred_check
        %p266 = pneg %p122
      $region42: #{_lambda_.7} parent=39 // pred_check_branch
        %268 = sbr.rel (%p266) target = $region44
      $region43: #{_lambda_.7} parent=39 // pred_region
        %p269 = scmp.lt.s32.totalorder %s20, 1
        %s270 = scalar_select %p269, %s20, 1
        %p271 = scmp.lt.s32.totalorder %s21, 0
        %s272 = scalar_select %p271, %s21, 0
        %s273 = sadd.s32 %s272, %s270
        %s274 = smul.addr %s273, 4
        %s275 = scalar_lea.vmem %s3, %s274
      $region44: #{_lambda_.7} parent=39 // pred_fallthru
        _
    $region40: #{_lambda_.7} parent=5 // pred_fallthru
      _
  $region6: #{_lambda_.7} parent=0 // loop_footer
    %s13 = sadd.s32 1, %s9
  $region7: #{_lambda_.7} parent=0 // loop_footer_branch
    %8 = sbr.rel target = $region3
  $region8: #{_lambda_.7} parent=0 // loop_exit
    _

// kernel: _lambda_.8
$region0: #{_lambda_.8}
  #allocation0 [shape = 'u32[]', space=smem, size = 0x4, offset = 0x4, fixed_abs, tag = 'smem constant byte address 0x4 - core index']
  #allocation1 [shape = 'u32[72,128]{1,0:T(1,128)}', space=vmem, size = 0x9000, scoped, tag = 'internal scratch']
  %s0 = inlined_call_operand.vmem [shape: bf16[2,72,16], index: 0, kind: input, shape index: {}]
  %s1 = inlined_call_operand.vmem [shape: bf16[16,72], index: 1, kind: input, shape index: {}]
  %s2 = inlined_call_operand.vmem [shape: f32[16,1], index: 2, kind: input, shape index: {}]
  %s3 = inlined_call_operand.vmem [shape: bf16[2,16,16], index: 3, kind: output, shape index: {}]
  %s4 = sld [smem:[#allocation0]]
  $region45: #{_lambda_.8} parent=0
    _
  %s6 = ssub.s32 1, %s4
  %s7 = scalar_select 0, %s6, %s4
  loop: start=0, step=1, limit=4
  $region2: #{_lambda_.8} parent=0 // loop_pre_header
    _
  $region3: #{_lambda_.8} parent=0 // loop_header
    %s9 = sphi 0, %s13
    %p10 = scmp.ge.s32.totalorder %s9, 4
    %s16 = sphi 0, %s28
    %s17 = sphi 0, %s24
    %s18 = sphi 0, %s16
    %s19 = sphi 0, %s17
    %s20 = sphi 0, %s18
    %s21 = sphi 0, %s19
    %s33 = sphi 0, %s35
    %s36 = sphi 0, %s33
    %s37 = sphi 0, %s36
    %s53 = sphi 0, %s37
    %s57 = sphi 0, %s57
    %s59 = sphi 0, %s57
    %s60 = sphi 0, %s59
    %s74 = sphi 0, %s60
    %s78 = sphi 0, %s78
    %s80 = sphi 0, %s78
    %s81 = sphi 0, %s80
    %s95 = sphi 0, %s81
    %s103 = sphi 0, %s105
    %s106 = sphi 0, %s103
    %s107 = sphi 0, %s106
    %s123 = sphi 0, %s107
  $region4: #{_lambda_.8} parent=0 // loop_header_branch
    %12 = sbr.rel (%p10) target = $region8
  $region5: #{_lambda_.8} parent=0 // loop_body
    %s14 = ssub.s32 %s9, 1
    %s15 = ssub.s32 %s9, 2
    %s22 = sadd.s32 1, %s17
    %p23 = scmp.ge.s32.totalorder %s22, 1
    %s24 = scalar_select %p23, 0, %s22
    %s25 = sadd.s32 1, %s16
    %s26 = scalar_select %p23, %s25, %s16
    %p27 = scmp.ge.s32.totalorder %s26, 2
    %s28 = scalar_select %p27, 0, %s26
    %s29 = ssub.s32 %s16, %s28
    %s30 = ssub.s32 %s17, %s24
    %s31 = sor.u32 %s29, %s30
    %p32 = scmp.eq.s32.totalorder %s31, 0
    %s34 = sadd.s32 %s33, 1
    %s35 = scalar_select %p32, %s33, %s34
    %p38 = pneg %p32
    %p39 = scmp.eq.s32.totalorder %s9, 1
    %p40 = por %p38, %p39
    %p41 = scmp.ne.s32.totalorder %s33, %s36
    %p42 = scmp.eq.s32.totalorder %s9, 0
    %p43 = por %p41, %p42
    %p44 = scmp.ne.s32.totalorder %s33, %s36
    %p45 = scmp.eq.s32.totalorder %s14, 1
    %p46 = por %p44, %p45
    %p47 = scmp.ne.s32.totalorder %s36, %s37
    %p48 = scmp.eq.s32.totalorder %s14, 0
    %p49 = por %p47, %p48
    %p50 = scmp.ne.s32.totalorder %s36, %s37
    %p51 = scmp.eq.s32.totalorder %s15, 1
    %p52 = por %p50, %p51
    %p54 = scmp.ne.s32.totalorder %s37, %s53
    %p55 = scmp.eq.s32.totalorder %s15, 0
    %p56 = por %p54, %p55
    %s58 = sadd.s32 %s57, 1
    %p61 = scmp.eq.s32.totalorder %s9, 1
    %p62 = scmp.ne.s32.totalorder %s57, %s59
    %p63 = scmp.eq.s32.totalorder %s9, 0
    %p64 = por %p62, %p63
    %p65 = scmp.ne.s32.totalorder %s57, %s59
    %p66 = scmp.eq.s32.totalorder %s14, 1
    %p67 = por %p65, %p66
    %p68 = scmp.ne.s32.totalorder %s59, %s60
    %p69 = scmp.eq.s32.totalorder %s14, 0
    %p70 = por %p68, %p69
    %p71 = scmp.ne.s32.totalorder %s59, %s60
    %p72 = scmp.eq.s32.totalorder %s15, 1
    %p73 = por %p71, %p72
    %p75 = scmp.ne.s32.totalorder %s60, %s74
    %p76 = scmp.eq.s32.totalorder %s15, 0
    %p77 = por %p75, %p76
    %s79 = sadd.s32 %s78, 1
    %p82 = scmp.eq.s32.totalorder %s9, 1
    %p83 = scmp.ne.s32.totalorder %s78, %s80
    %p84 = scmp.eq.s32.totalorder %s9, 0
    %p85 = por %p83, %p84
    %p86 = scmp.ne.s32.totalorder %s78, %s80
    %p87 = scmp.eq.s32.totalorder %s14, 1
    %p88 = por %p86, %p87
    %p89 = scmp.ne.s32.totalorder %s80, %s81
    %p90 = scmp.eq.s32.totalorder %s14, 0
    %p91 = por %p89, %p90
    %p92 = scmp.ne.s32.totalorder %s80, %s81
    %p93 = scmp.eq.s32.totalorder %s15, 1
    %p94 = por %p92, %p93
    %p96 = scmp.ne.s32.totalorder %s81, %s95
    %p97 = scmp.eq.s32.totalorder %s15, 0
    %p98 = por %p96, %p97
    %s99 = ssub.s32 %s16, %s28
    %s100 = ssub.s32 %s17, %s24
    %s101 = sor.u32 %s99, %s100
    %p102 = scmp.eq.s32.totalorder %s101, 0
    %s104 = sadd.s32 %s103, 1
    %s105 = scalar_select %p102, %s103, %s104
    %p108 = pneg %p102
    %p109 = scmp.eq.s32.totalorder %s9, 1
    %p110 = por %p108, %p109
    %p111 = scmp.ne.s32.totalorder %s103, %s106
    %p112 = scmp.eq.s32.totalorder %s9, 0
    %p113 = por %p111, %p112
    %p114 = scmp.ne.s32.totalorder %s103, %s106
    %p115 = scmp.eq.s32.totalorder %s14, 1
    %p116 = por %p114, %p115
    %p117 = scmp.ne.s32.totalorder %s106, %s107
    %p118 = scmp.eq.s32.totalorder %s14, 0
    %p119 = por %p117, %p118
    %p120 = scmp.ne.s32.totalorder %s106, %s107
    %p121 = scmp.eq.s32.totalorder %s15, 1
    %p122 = por %p120, %p121
    %p124 = scmp.ne.s32.totalorder %s107, %s123
    %p125 = scmp.eq.s32.totalorder %s15, 0
    %p126 = por %p124, %p125
    %p127 = scmp.le.s32.totalorder 1, %s9
    %p128 = scmp.lt.s32.totalorder %s9, 3
    %p129 = pnand %p127, %p128
    %p130 = pneg %p129
    // Predicated region
    $region9: #{_lambda_.8} parent=5 // pred_check
      _
    $region10: #{_lambda_.8} parent=5 // pred_check_branch
      %132 = sbr.rel (%p129) target = $region12
    $region11: #{_lambda_.8} parent=5 // pred_region
      %s133 = ssub.s32 %s9, 1
      // Predicated region
      $region13: #{_lambda_.8} parent=11 // pred_check
        %p134 = pneg %p70
      $region14: #{_lambda_.8} parent=11 // pred_check_branch
        %136 = sbr.rel (%p134) target = $region16
      $region15: #{_lambda_.8} parent=11 // pred_region
        _
      $region16: #{_lambda_.8} parent=11 // pred_fallthru
        _
      // Predicated region
      $region17: #{_lambda_.8} parent=11 // pred_check
        %p137 = pneg %p91
      $region18: #{_lambda_.8} parent=11 // pred_check_branch
        %139 = sbr.rel (%p137) target = $region20
      $region19: #{_lambda_.8} parent=11 // pred_region
        _
      $region20: #{_lambda_.8} parent=11 // pred_fallthru
        _
    $region12: #{_lambda_.8} parent=5 // pred_fallthru
      _
    %p140 = scmp.lt.s32.totalorder %s9, 2
    // Predicated region
    $region21: #{_lambda_.8} parent=5 // pred_check
      %p141 = pneg %p140
    $region22: #{_lambda_.8} parent=5 // pred_check_branch
      %143 = sbr.rel (%p141) target = $region24
    $region23: #{_lambda_.8} parent=5 // pred_region
      // Predicated region
      $region25: #{_lambda_.8} parent=23 // pred_check
        %p144 = pneg %p43
      $region26: #{_lambda_.8} parent=23 // pred_check_branch
        %146 = sbr.rel (%p144) target = $region28
      $region27: #{_lambda_.8} parent=23 // pred_region
        %p147 = scmp.lt.s32.totalorder %s16, 1
        %s148 = scalar_select %p147, %s16, 1
        %p149 = scmp.lt.s32.totalorder %s17, 0
        %s150 = scalar_select %p149, %s17, 0
        %s151 = smul.addr %s148, 9
        %s152 = sadd.s32 %s150, %s151
        %s153 = smul.addr %s152, 4
        %s154 = scalar_lea.vmem %s0, %s153
      $region28: #{_lambda_.8} parent=23 // pred_fallthru
        _
    $region24: #{_lambda_.8} parent=5 // pred_fallthru
      _
    %p155 = scmp.le.s32.totalorder 1, %s9
    %p156 = scmp.lt.s32.totalorder %s9, 3
    %p157 = pnand %p155, %p156
    %p158 = pneg %p157
    // Predicated region
    $region29: #{_lambda_.8} parent=5 // pred_check
      _
    $region30: #{_lambda_.8} parent=5 // pred_check_branch
      %160 = sbr.rel (%p157) target = $region32
    $region31: #{_lambda_.8} parent=5 // pred_region
      %s161 = ssub.s32 %s9, 1
      %p162 = scmp.lt.s32.totalorder %s18, 1
      %s163 = scalar_select %p162, %s18, 1
      %p164 = scmp.lt.s32.totalorder %s19, 0
      %s165 = scalar_select %p164, %s19, 0
      %s166 = smul.addr %s163, 9
      %s167 = sadd.s32 %s165, %s166
      %s168 = smul.addr %s167, 4
      %s169 = scalar_lea.vmem %s0, %s168
      %p170 = pneg %p49
      %p171 = pneg %p46
      %p172 = pneg %p70
      %p173 = pneg %p67
      %p174 = pneg %p91
      %p175 = pneg %p88
      %p176 = pneg %p119
      %p177 = pneg %p116
      %p178 = scmp.lt.s32.totalorder %s18, 1
      %s179 = scalar_select %p178, %s18, 1
      %p180 = scmp.lt.s32.totalorder %s19, 0
      %s181 = scalar_select %p180, %s19, 0
      %s182 = smul.addr %s179, 2
      %s183 = sadd.s32 %s181, %s182
      %s184 = smul.addr %s183, 4
      %s185 = scalar_lea.vmem %s3, %s184
      %p186 = scmp.lt.s32.totalorder %s18, 1
      %s187 = scalar_select %p186, %s18, 1
      %p188 = scmp.lt.s32.totalorder %s19, 0
      %s189 = scalar_select %p188, %s19, 0
      %s190 = smul.addr %s187, 9
      %s191 = sadd.s32 %s189, %s190
      %s192 = smul.addr %s191, 4
      %s193 = scalar_lea.vmem %s0, %s192
      %p194 = scmp.lt.s32.totalorder %s18, 1
      %s195 = scalar_select %p194, %s18, 1
      %p196 = scmp.lt.s32.totalorder %s19, 0
      %s197 = scalar_select %p196, %s19, 0
      %s198 = smul.addr %s195, 2
      %s199 = sadd.s32 %s197, %s198
      %s200 = smul.addr %s199, 4
      %s201 = scalar_lea.vmem %s3, %s200
      %v203 = vld [vmem:[%s1] sm:$0xf]
      %v204 = vld [vmem:[%s1 + $0x4] sm:$0xf]
      %v205 = vld [vmem:[%s193] sm:$0xf]
      %v206 = vld [vmem:[%s193 + $0x4] sm:$0xf]
      %v207 = vld [vmem:[%s193 + $0x8] sm:$0xf]
      %v208 = vld [vmem:[%s193 + $0xc] sm:$0xf]
      %v209 = vld [vmem:[%s193 + $0x10] sm:$0xf]
      %v210 = vld [vmem:[%s193 + $0x14] sm:$0xf]
      %v211 = vld [vmem:[%s193 + $0x18] sm:$0xf]
      %v212 = vld [vmem:[%s193 + $0x1c] sm:$0xf]
      %v213 = vld [vmem:[%s193 + $0x20] sm:$0xf]
      %v214 = vld [vmem:[%s2] sm:$0xff]
      %v215 = vld [vmem:[%s2 + $0x8] sm:$0xff]
      %217 = vset.pattern.permute.xlu0 0
      %218 = vperm.xlu0 %217, %v214
      %v219 = vpop.permute.xlu0 %218
      %222 = vset.pattern.permute.xlu0 0
      %223 = vperm.xlu0 %222, %v215
      %v224 = vpop.permute.xlu0 %223
      %v228 = vunpack.c.l.b16 %v203
      %v229 = vunpack.c.l.b16 %v204
      %v230 = vpack.c.b16 %v229, %v228
      %v240 = vunpack.c.l.b16 %v205
      %v241 = vunpack.c.l.b16 %v206
      %v242 = vunpack.c.l.b16 %v207
      %v243 = vunpack.c.l.b16 %v208
      %v244 = vunpack.c.l.b16 %v209
      %v245 = vunpack.c.l.b16 %v210
      %v246 = vunpack.c.l.b16 %v211
      %v247 = vunpack.c.l.b16 %v212
      %v248 = vunpack.c.l.b16 %v213
      %v249 = vpack.c.b16 %v241, %v240
      %v250 = vpack.c.b16 %v243, %v242
      %v251 = vpack.c.b16 %v245, %v244
      %v252 = vpack.c.b16 %v247, %v246
      %v253 = vpack.c.b16 %v248, %v248
      %vm258 = vcmask 588800
      %v260 = vsel %vm258, %v230, 0
      %vm262 = vcmask 1043456
      %v264 = vsel %vm262, %v253, 0
      %266 = vmatpush.bf16.msra.mxu0 0
      %267 = vmatpush.bf16.msra.mxu0 0
      %268 = vmatpush.bf16.msra.mxu0 0
      %269 = vmatpush.bf16.msra.mxu0 %v264
      %270 = vmatpush.bf16.msra.mxu0 %v252
      %271 = vmatpush.bf16.msra.mxu0 %v251
      %272 = vmatpush.bf16.msra.mxu0 %v250
      %273 = vmatpush.bf16.msra.mxu0 %v249
      %274 = vmatmul.bf16.gmra.mxu0 %v260
      %v275 = vpop.f32.mrf.mxu0
      %v276 = vadd.f32 %v219, %v275
      %v277 = vpop.f32.mrf.mxu0
      %v278 = vadd.f32 %v224, %v277
      %279 = vdwg.mxu0
      %v280 = vmax.f32 %v276, 0.0
      %v281 = vmax.f32 %v278, 0.0
      %v282 = vpack.c.bf16 %v280, %v280
      %v283 = vpack.c.bf16 %v281, %v281
      %vm284 = vcmask 125952
      %285 = vst.msk [vmem:[%s201] sm:$0xf] %vm284, %v282
      %286 = vst.msk [vmem:[%s201 + $0x4] sm:$0xf] %vm284, %v283
      %p287 = scmp.lt.s32.totalorder %s18, 1
      %s288 = scalar_select %p287, %s18, 1
      %p289 = scmp.lt.s32.totalorder %s19, 0
      %s290 = scalar_select %p289, %s19, 0
      %s291 = smul.addr %s288, 2
      %s292 = sadd.s32 %s290, %s291
      %s293 = smul.addr %s292, 4
      %s294 = scalar_lea.vmem %s3, %s293
      // Predicated region
      $region33: #{_lambda_.8} parent=31 // pred_check
        %p295 = pneg %p116
      $region34: #{_lambda_.8} parent=31 // pred_check_branch
        %297 = sbr.rel (%p295) target = $region36
      $region35: #{_lambda_.8} parent=31 // pred_region
        _
      $region36: #{_lambda_.8} parent=31 // pred_fallthru
        _
    $region32: #{_lambda_.8} parent=5 // pred_fallthru
      _
    %p298 = scmp.le.s32.totalorder 2, %s9
    // Predicated region
    $region37: #{_lambda_.8} parent=5 // pred_check
      %p299 = pneg %p298
    $region38: #{_lambda_.8} parent=5 // pred_check_branch
      %301 = sbr.rel (%p299) target = $region40
    $region39: #{_lambda_.8} parent=5 // pred_region
      %s302 = ssub.s32 %s9, 2
      // Predicated region
      $region41: #{_lambda_.8} parent=39 // pred_check
        %p303 = pneg %p122
      $region42: #{_lambda_.8} parent=39 // pred_check_branch
        %305 = sbr.rel (%p303) target = $region44
      $region43: #{_lambda_.8} parent=39 // pred_region
        %p306 = scmp.lt.s32.totalorder %s20, 1
        %s307 = scalar_select %p306, %s20, 1
        %p308 = scmp.lt.s32.totalorder %s21, 0
        %s309 = scalar_select %p308, %s21, 0
        %s310 = smul.addr %s307, 2
        %s311 = sadd.s32 %s309, %s310
        %s312 = smul.addr %s311, 4
        %s313 = scalar_lea.vmem %s3, %s312
      $region44: #{_lambda_.8} parent=39 // pred_fallthru
        _
    $region40: #{_lambda_.8} parent=5 // pred_fallthru
      _
  $region6: #{_lambda_.8} parent=0 // loop_footer
    %s13 = sadd.s32 1, %s9
  $region7: #{_lambda_.8} parent=0 // loop_footer_branch
    %8 = sbr.rel target = $region3
  $region8: #{_lambda_.8} parent=0 // loop_exit
    _

// kernel: _lambda_.13
$region0: #{_lambda_.13}
  #allocation0 [shape = 'u32[]', space=smem, size = 0x4, offset = 0x4, fixed_abs, tag = 'smem constant byte address 0x4 - core index']
  #allocation1 [shape = 'u32[72,128]{1,0:T(1,128)}', space=vmem, size = 0x9000, scoped, tag = 'internal scratch']
  %s0 = inlined_call_operand.vmem [shape: bf16[2,16,4,4], index: 0, kind: input, shape index: {}]
  %s1 = inlined_call_operand.vmem [shape: bf16[2,16,4,6], index: 1, kind: input, shape index: {}]
  %s2 = inlined_call_operand.hbm [shape: f32[2,4,4], index: 2, kind: output, shape index: {}]
  %s3 = sld [smem:[#allocation0]]
  $region41: #{_lambda_.13} parent=0
    _
  %s5 = ssub.s32 1, %s3
  %s6 = scalar_select 0, %s5, %s3
  $region1: #{_lambda_.13} parent=0
    #allocation2 [shape = 'u8[4096]{0}', space=vmem, size = 0x1000, scoped, tag = 'output window, operand 0']
    #allocation3 [shape = 's32[2]{0}', space=sflag, size = 0x8, scoped, tag = 'scoped memory for _lambda_.13']
    %7 = vsyncpa [#allocation3], 0
    %s8 = scalar_lea.sflag [#allocation3], 1
    %9 = vsyncpa %s8, 0
    loop: start=0, step=1, limit=4
    $region2: #{_lambda_.13} parent=1 // loop_pre_header
      _
    $region3: #{_lambda_.13} parent=1 // loop_header
      %s11 = sphi 0, %s15
      %p12 = scmp.ge.s32.totalorder %s11, 4
      %s18 = sphi 0, %s30
      %s19 = sphi 0, %s26
      %s20 = sphi 0, %s18
      %s21 = sphi 0, %s19
      %s22 = sphi 0, %s20
      %s23 = sphi 0, %s21
      %s35 = sphi 0, %s37
      %s38 = sphi 0, %s35
      %s39 = sphi 0, %s38
      %s55 = sphi 0, %s39
      %s63 = sphi 0, %s65
      %s66 = sphi 0, %s63
      %s67 = sphi 0, %s66
      %s83 = sphi 0, %s67
      %s91 = sphi 0, %s93
      %s94 = sphi 0, %s91
      %s95 = sphi 0, %s94
      %s111 = sphi 0, %s95
    $region4: #{_lambda_.13} parent=1 // loop_header_branch
      %14 = sbr.rel (%p12) target = $region8
    $region5: #{_lambda_.13} parent=1 // loop_body
      %s16 = ssub.s32 %s11, 1
      %s17 = ssub.s32 %s11, 2
      %s24 = sadd.s32 1, %s19
      %p25 = scmp.ge.s32.totalorder %s24, 1
      %s26 = scalar_select %p25, 0, %s24
      %s27 = sadd.s32 1, %s18
      %s28 = scalar_select %p25, %s27, %s18
      %p29 = scmp.ge.s32.totalorder %s28, 2
      %s30 = scalar_select %p29, 0, %s28
      %s31 = ssub.s32 %s18, %s30
      %s32 = ssub.s32 %s19, %s26
      %s33 = sor.u32 %s31, %s32
      %p34 = scmp.eq.s32.totalorder %s33, 0
      %s36 = sadd.s32 %s35, 1
      %s37 = scalar_select %p34, %s35, %s36
      %p40 = pneg %p34
      %p41 = scmp.eq.s32.totalorder %s11, 1
      %p42 = por %p40, %p41
      %p43 = scmp.ne.s32.totalorder %s35, %s38
      %p44 = scmp.eq.s32.totalorder %s11, 0
      %p45 = por %p43, %p44
      %p46 = scmp.ne.s32.totalorder %s35, %s38
      %p47 = scmp.eq.s32.totalorder %s16, 1
      %p48 = por %p46, %p47
      %p49 = scmp.ne.s32.totalorder %s38, %s39
      %p50 = scmp.eq.s32.totalorder %s16, 0
      %p51 = por %p49, %p50
      %p52 = scmp.ne.s32.totalorder %s38, %s39
      %p53 = scmp.eq.s32.totalorder %s17, 1
      %p54 = por %p52, %p53
      %p56 = scmp.ne.s32.totalorder %s39, %s55
      %p57 = scmp.eq.s32.totalorder %s17, 0
      %p58 = por %p56, %p57
      %s59 = ssub.s32 %s18, %s30
      %s60 = ssub.s32 %s19, %s26
      %s61 = sor.u32 %s59, %s60
      %p62 = scmp.eq.s32.totalorder %s61, 0
      %s64 = sadd.s32 %s63, 1
      %s65 = scalar_select %p62, %s63, %s64
      %p68 = pneg %p62
      %p69 = scmp.eq.s32.totalorder %s11, 1
      %p70 = por %p68, %p69
      %p71 = scmp.ne.s32.totalorder %s63, %s66
      %p72 = scmp.eq.s32.totalorder %s11, 0
      %p73 = por %p71, %p72
      %p74 = scmp.ne.s32.totalorder %s63, %s66
      %p75 = scmp.eq.s32.totalorder %s16, 1
      %p76 = por %p74, %p75
      %p77 = scmp.ne.s32.totalorder %s66, %s67
      %p78 = scmp.eq.s32.totalorder %s16, 0
      %p79 = por %p77, %p78
      %p80 = scmp.ne.s32.totalorder %s66, %s67
      %p81 = scmp.eq.s32.totalorder %s17, 1
      %p82 = por %p80, %p81
      %p84 = scmp.ne.s32.totalorder %s67, %s83
      %p85 = scmp.eq.s32.totalorder %s17, 0
      %p86 = por %p84, %p85
      %s87 = ssub.s32 %s18, %s30
      %s88 = ssub.s32 %s19, %s26
      %s89 = sor.u32 %s87, %s88
      %p90 = scmp.eq.s32.totalorder %s89, 0
      %s92 = sadd.s32 %s91, 1
      %s93 = scalar_select %p90, %s91, %s92
      %p96 = pneg %p90
      %p97 = scmp.eq.s32.totalorder %s11, 1
      %p98 = por %p96, %p97
      %p99 = scmp.ne.s32.totalorder %s91, %s94
      %p100 = scmp.eq.s32.totalorder %s11, 0
      %p101 = por %p99, %p100
      %p102 = scmp.ne.s32.totalorder %s91, %s94
      %p103 = scmp.eq.s32.totalorder %s16, 1
      %p104 = por %p102, %p103
      %p105 = scmp.ne.s32.totalorder %s94, %s95
      %p106 = scmp.eq.s32.totalorder %s16, 0
      %p107 = por %p105, %p106
      %p108 = scmp.ne.s32.totalorder %s94, %s95
      %p109 = scmp.eq.s32.totalorder %s17, 1
      %p110 = por %p108, %p109
      %p112 = scmp.ne.s32.totalorder %s95, %s111
      %p113 = scmp.eq.s32.totalorder %s17, 0
      %p114 = por %p112, %p113
      %p115 = scmp.le.s32.totalorder 1, %s11
      %p116 = scmp.lt.s32.totalorder %s11, 3
      %p117 = pnand %p115, %p116
      %p118 = pneg %p117
      // Predicated region
      $region9: #{_lambda_.13} parent=5 // pred_check
        _
      $region10: #{_lambda_.13} parent=5 // pred_check_branch
        %120 = sbr.rel (%p117) target = $region12
      $region11: #{_lambda_.13} parent=5 // pred_region
        %s121 = ssub.s32 %s11, 1
      $region12: #{_lambda_.13} parent=5 // pred_fallthru
        _
      %p122 = scmp.lt.s32.totalorder %s11, 2
      // Predicated region
      $region13: #{_lambda_.13} parent=5 // pred_check
        %p123 = pneg %p122
      $region14: #{_lambda_.13} parent=5 // pred_check_branch
        %125 = sbr.rel (%p123) target = $region16
      $region15: #{_lambda_.13} parent=5 // pred_region
        // Predicated region
        $region17: #{_lambda_.13} parent=15 // pred_check
          %p126 = pneg %p45
        $region18: #{_lambda_.13} parent=15 // pred_check_branch
          %128 = sbr.rel (%p126) target = $region20
        $region19: #{_lambda_.13} parent=15 // pred_region
          %p129 = scmp.lt.s32.totalorder %s18, 1
          %s130 = scalar_select %p129, %s18, 1
          %p131 = scmp.lt.s32.totalorder %s19, 0
          %s132 = scalar_select %p131, %s19, 0
          %s133 = smul.addr %s130, 16
          %s134 = sadd.s32 %s132, %s133
          %s135 = smul.addr %s134, 2
          %s136 = scalar_lea.vmem %s0, %s135
        $region20: #{_lambda_.13} parent=15 // pred_fallthru
          _
        // Predicated region
        $region21: #{_lambda_.13} parent=15 // pred_check
          %p137 = pneg %p73
        $region22: #{_lambda_.13} parent=15 // pred_check_branch
          %139 = sbr.rel (%p137) target = $region24
        $region23: #{_lambda_.13} parent=15 // pred_region
          %p140 = scmp.lt.s32.totalorder %s18, 1
          %s141 = scalar_select %p140, %s18, 1
          %p142 = scmp.lt.s32.totalorder %s19, 0
          %s143 = scalar_select %p142, %s19, 0
          %s144 = smul.addr %s141, 16
          %s145 = sadd.s32 %s143, %s144
          %s146 = smul.addr %s145, 2
          %s147 = scalar_lea.vmem %s1, %s146
        $region24: #{_lambda_.13} parent=15 // pred_fallthru
          _
      $region16: #{_lambda_.13} parent=5 // pred_fallthru
        _
      %p148 = scmp.le.s32.totalorder 1, %s11
      %p149 = scmp.lt.s32.totalorder %s11, 3
      %p150 = pnand %p148, %p149
      %p151 = pneg %p150
      // Predicated region
      $region25: #{_lambda_.13} parent=5 // pred_check
        _
      $region26: #{_lambda_.13} parent=5 // pred_check_branch
        %153 = sbr.rel (%p150) target = $region28
      $region27: #{_lambda_.13} parent=5 // pred_region
        %s154 = ssub.s32 %s11, 1
        %p155 = scmp.lt.s32.totalorder %s20, 1
        %s156 = scalar_select %p155, %s20, 1
        %p157 = scmp.lt.s32.totalorder %s21, 0
        %s158 = scalar_select %p157, %s21, 0
        %s159 = smul.addr %s156, 16
        %s160 = sadd.s32 %s158, %s159
        %s161 = smul.addr %s160, 2
        %s162 = scalar_lea.vmem %s0, %s161
        %p163 = pneg %p51
        %p164 = pneg %p48
        %p165 = scmp.lt.s32.totalorder %s20, 1
        %s166 = scalar_select %p165, %s20, 1
        %p167 = scmp.lt.s32.totalorder %s21, 0
        %s168 = scalar_select %p167, %s21, 0
        %s169 = smul.addr %s166, 16
        %s170 = sadd.s32 %s168, %s169
        %s171 = smul.addr %s170, 2
        %s172 = scalar_lea.vmem %s1, %s171
        %p173 = pneg %p79
        %p174 = pneg %p76
        %p175 = pneg %p107
        %p176 = pneg %p104
        %s177 = sand.u32 %s94, 1
        %s178 = scalar_lea.sflag [#allocation3], %s177
        %s179 = sand.u32 %s94, 1
        %s180 = smul.addr %s179, 4
        %s181 = scalar_lea.vmem [#allocation2], %s180
        %p182 = scmp.lt.s32.totalorder %s20, 1
        %s183 = scalar_select %p182, %s20, 1
        %p184 = scmp.lt.s32.totalorder %s21, 0
        %s185 = scalar_select %p184, %s21, 0
        %s186 = smul.addr %s183, 16
        %s187 = sadd.s32 %s185, %s186
        %s188 = smul.addr %s187, 2
        %s189 = scalar_lea.vmem %s0, %s188
        %p190 = scmp.lt.s32.totalorder %s20, 1
        %s191 = scalar_select %p190, %s20, 1
        %p192 = scmp.lt.s32.totalorder %s21, 0
        %s193 = scalar_select %p192, %s21, 0
        %s194 = smul.addr %s191, 16
        %s195 = sadd.s32 %s193, %s194
        %s196 = smul.addr %s195, 2
        %s197 = scalar_lea.vmem %s1, %s196
        %v198 = vld [vmem:[%s189] sm:$0x3]
        %v199 = vld [vmem:[%s189 + $0x2] sm:$0x3]
        %v200 = vld [vmem:[%s189 + $0x4] sm:$0x3]
        %v201 = vld [vmem:[%s189 + $0x6] sm:$0x3]
        %v202 = vld [vmem:[%s189 + $0x8] sm:$0x3]
        %v203 = vld [vmem:[%s189 + $0xa] sm:$0x3]
        %v204 = vld [vmem:[%s189 + $0xc] sm:$0x3]
        %v205 = vld [vmem:[%s189 + $0xe] sm:$0x3]
        %v206 = vld [vmem:[%s189 + $0x10] sm:$0x3]
        %v207 = vld [vmem:[%s189 + $0x12] sm:$0x3]
        %v208 = vld [vmem:[%s189 + $0x14] sm:$0x3]
        %v209 = vld [vmem:[%s189 + $0x16] sm:$0x3]
        %v210 = vld [vmem:[%s189 + $0x18] sm:$0x3]
        %v211 = vld [vmem:[%s189 + $0x1a] sm:$0x3]
        %v212 = vld [vmem:[%s189 + $0x1c] sm:$0x3]
        %v213 = vld [vmem:[%s189 + $0x1e] sm:$0x3]
        %v214 = vunpack.c.l.bf16 %v198
        %v215 = vunpack.c.l.bf16 %v199
        %v216 = vunpack.c.l.bf16 %v200
        %v217 = vunpack.c.l.bf16 %v201
        %v218 = vunpack.c.l.bf16 %v202
        %v219 = vunpack.c.l.bf16 %v203
        %v220 = vunpack.c.l.bf16 %v204
        %v221 = vunpack.c.l.bf16 %v205
        %v222 = vunpack.c.l.bf16 %v206
        %v223 = vunpack.c.l.bf16 %v207
        %v224 = vunpack.c.l.bf16 %v208
        %v225 = vunpack.c.l.bf16 %v209
        %v226 = vunpack.c.l.bf16 %v210
        %v227 = vunpack.c.l.bf16 %v211
        %v228 = vunpack.c.l.bf16 %v212
        %v229 = vunpack.c.l.bf16 %v213
        %v230 = vld [vmem:[%s197] sm:$0x3]
        %v231 = vld [vmem:[%s197 + $0x2] sm:$0x3]
        %v232 = vld [vmem:[%s197 + $0x4] sm:$0x3]
        %v233 = vld [vmem:[%s197 + $0x6] sm:$0x3]
        %v234 = vld [vmem:[%s197 + $0x8] sm:$0x3]
        %v235 = vld [vmem:[%s197 + $0xa] sm:$0x3]
        %v236 = vld [vmem:[%s197 + $0xc] sm:$0x3]
        %v237 = vld [vmem:[%s197 + $0xe] sm:$0x3]
        %v238 = vld [vmem:[%s197 + $0x10] sm:$0x3]
        %v239 = vld [vmem:[%s197 + $0x12] sm:$0x3]
        %v240 = vld [vmem:[%s197 + $0x14] sm:$0x3]
        %v241 = vld [vmem:[%s197 + $0x16] sm:$0x3]
        %v242 = vld [vmem:[%s197 + $0x18] sm:$0x3]
        %v243 = vld [vmem:[%s197 + $0x1a] sm:$0x3]
        %v244 = vld [vmem:[%s197 + $0x1c] sm:$0x3]
        %v245 = vld [vmem:[%s197 + $0x1e] sm:$0x3]
        %v246 = vunpack.c.l.bf16 %v230
        %v247 = vunpack.c.l.bf16 %v231
        %v248 = vunpack.c.l.bf16 %v232
        %v249 = vunpack.c.l.bf16 %v233
        %v250 = vunpack.c.l.bf16 %v234
        %v251 = vunpack.c.l.bf16 %v235
        %v252 = vunpack.c.l.bf16 %v236
        %v253 = vunpack.c.l.bf16 %v237
        %v254 = vunpack.c.l.bf16 %v238
        %v255 = vunpack.c.l.bf16 %v239
        %v256 = vunpack.c.l.bf16 %v240
        %v257 = vunpack.c.l.bf16 %v241
        %v258 = vunpack.c.l.bf16 %v242
        %v259 = vunpack.c.l.bf16 %v243
        %v260 = vunpack.c.l.bf16 %v244
        %v261 = vunpack.c.l.bf16 %v245
        %278 = vrot.lane.b32.xlu0 %v246, 126
        %v279 = vpop.permute.xlu0 %278
        %280 = vrot.lane.b32.xlu0 %v247, 126
        %v281 = vpop.permute.xlu0 %280
        %282 = vrot.lane.b32.xlu0 %v248, 126
        %v283 = vpop.permute.xlu0 %282
        %284 = vrot.lane.b32.xlu0 %v249, 126
        %v285 = vpop.permute.xlu0 %284
        %286 = vrot.lane.b32.xlu0 %v250, 126
        %v287 = vpop.permute.xlu0 %286
        %288 = vrot.lane.b32.xlu0 %v251, 126
        %v289 = vpop.permute.xlu0 %288
        %290 = vrot.lane.b32.xlu0 %v252, 126
        %v291 = vpop.permute.xlu0 %290
        %292 = vrot.lane.b32.xlu0 %v253, 126
        %v293 = vpop.permute.xlu0 %292
        %294 = vrot.lane.b32.xlu0 %v254, 126
        %v295 = vpop.permute.xlu0 %294
        %296 = vrot.lane.b32.xlu0 %v255, 126
        %v297 = vpop.permute.xlu0 %296
        %298 = vrot.lane.b32.xlu0 %v256, 126
        %v299 = vpop.permute.xlu0 %298
        %300 = vrot.lane.b32.xlu0 %v257, 126
        %v301 = vpop.permute.xlu0 %300
        %302 = vrot.lane.b32.xlu0 %v258, 126
        %v303 = vpop.permute.xlu0 %302
        %304 = vrot.lane.b32.xlu0 %v259, 126
        %v305 = vpop.permute.xlu0 %304
        %306 = vrot.lane.b32.xlu0 %v260, 126
        %v307 = vpop.permute.xlu0 %306
        %308 = vrot.lane.b32.xlu0 %v261, 126
        %v309 = vpop.permute.xlu0 %308
        %v326 = vmul.f32 %v214, %v279
        %v327 = vmul.f32 %v215, %v281
        %v328 = vmul.f32 %v216, %v283
        %v329 = vmul.f32 %v217, %v285
        %v330 = vmul.f32 %v218, %v287
        %v331 = vmul.f32 %v219, %v289
        %v332 = vmul.f32 %v220, %v291
        %v333 = vmul.f32 %v221, %v293
        %v334 = vmul.f32 %v222, %v295
        %v335 = vmul.f32 %v223, %v297
        %v336 = vmul.f32 %v224, %v299
        %v337 = vmul.f32 %v225, %v301
        %v338 = vmul.f32 %v226, %v303
        %v339 = vmul.f32 %v227, %v305
        %v340 = vmul.f32 %v228, %v307
        %v341 = vmul.f32 %v229, %v309
        %vm342 = vcmask 27648
        %v343 = vsel %vm342, %v326, 0.0
        %v344 = vsel %vm342, %v327, 0.0
        %v345 = vadd.f32 %v343, %v344
        %v346 = vsel %vm342, %v328, 0.0
        %v347 = vadd.f32 %v345, %v346
        %v348 = vsel %vm342, %v329, 0.0
        %v349 = vadd.f32 %v347, %v348
        %v350 = vsel %vm342, %v330, 0.0
        %v351 = vadd.f32 %v349, %v350
        %v352 = vsel %vm342, %v331, 0.0
        %v353 = vadd.f32 %v351, %v352
        %v354 = vsel %vm342, %v332, 0.0
        %v355 = vadd.f32 %v353, %v354
        %v356 = vsel %vm342, %v333, 0.0
        %v357 = vadd.f32 %v355, %v356
        %v358 = vsel %vm342, %v334, 0.0
        %v359 = vadd.f32 %v357, %v358
        %v360 = vsel %vm342, %v335, 0.0
        %v361 = vadd.f32 %v359, %v360
        %v362 = vsel %vm342, %v336, 0.0
        %v363 = vadd.f32 %v361, %v362
        %v364 = vsel %vm342, %v337, 0.0
        %v365 = vadd.f32 %v363, %v364
        %v366 = vsel %vm342, %v338, 0.0
        %v367 = vadd.f32 %v365, %v366
        %v368 = vsel %vm342, %v339, 0.0
        %v369 = vadd.f32 %v367, %v368
        %v370 = vsel %vm342, %v340, 0.0
        %v371 = vadd.f32 %v369, %v370
        %v372 = vsel %vm342, %v341, 0.0
        %v373 = vadd.f32 %v371, %v372
        %v374 = vmul.f32 %v373, 0.0625
        %v375 = vmax.f32 %v374, -1e+30
        %v376 = vsub.f32 -1e+30, %v375
        %v377 = vmul.f32 %v376, 1.442695
        %v378 = vpow.pop %v377
        %v379 = vsub.f32 %v374, %v375
        %v380 = vmul.f32 %v379, 1.442695
        %v381 = vpow.pop %v380
        %v382 = vmul.f32 %v378, 0.0
        %v383 = vadd.f32 %v382, %v381
        %v384 = vmul.f32 %v381, 0.0
        %v385 = vadd.f32 %v382, %v384
        %386 = vrot.lane.b32.xlu0 %v246, 127
        %v387 = vpop.permute.xlu0 %386
        %388 = vrot.lane.b32.xlu0 %v247, 127
        %v389 = vpop.permute.xlu0 %388
        %390 = vrot.lane.b32.xlu0 %v248, 127
        %v391 = vpop.permute.xlu0 %390
        %392 = vrot.lane.b32.xlu0 %v249, 127
        %v393 = vpop.permute.xlu0 %392
        %394 = vrot.lane.b32.xlu0 %v250, 127
        %v395 = vpop.permute.xlu0 %394
        %396 = vrot.lane.b32.xlu0 %v251, 127
        %v397 = vpop.permute.xlu0 %396
        %398 = vrot.lane.b32.xlu0 %v252, 127
        %v399 = vpop.permute.xlu0 %398
        %400 = vrot.lane.b32.xlu0 %v253, 127
        %v401 = vpop.permute.xlu0 %400
        %402 = vrot.lane.b32.xlu0 %v254, 127
        %v403 = vpop.permute.xlu0 %402
        %404 = vrot.lane.b32.xlu0 %v255, 127
        %v405 = vpop.permute.xlu0 %404
        %406 = vrot.lane.b32.xlu0 %v256, 127
        %v407 = vpop.permute.xlu0 %406
        %408 = vrot.lane.b32.xlu0 %v257, 127
        %v409 = vpop.permute.xlu0 %408
        %410 = vrot.lane.b32.xlu0 %v258, 127
        %v411 = vpop.permute.xlu0 %410
        %412 = vrot.lane.b32.xlu0 %v259, 127
        %v413 = vpop.permute.xlu0 %412
        %414 = vrot.lane.b32.xlu0 %v260, 127
        %v415 = vpop.permute.xlu0 %414
        %416 = vrot.lane.b32.xlu0 %v261, 127
        %v417 = vpop.permute.xlu0 %416
        %v434 = vmul.f32 %v214, %v387
        %v435 = vmul.f32 %v215, %v389
        %v436 = vmul.f32 %v216, %v391
        %v437 = vmul.f32 %v217, %v393
        %v438 = vmul.f32 %v218, %v395
        %v439 = vmul.f32 %v219, %v397
        %v440 = vmul.f32 %v220, %v399
        %v441 = vmul.f32 %v221, %v401
        %v442 = vmul.f32 %v222, %v403
        %v443 = vmul.f32 %v223, %v405
        %v444 = vmul.f32 %v224, %v407
        %v445 = vmul.f32 %v225, %v409
        %v446 = vmul.f32 %v226, %v411
        %v447 = vmul.f32 %v227, %v413
        %v448 = vmul.f32 %v228, %v415
        %v449 = vmul.f32 %v229, %v417
        %v450 = vsel %vm342, %v434, 0.0
        %v451 = vsel %vm342, %v435, 0.0
        %v452 = vadd.f32 %v450, %v451
        %v453 = vsel %vm342, %v436, 0.0
        %v454 = vadd.f32 %v452, %v453
        %v455 = vsel %vm342, %v437, 0.0
        %v456 = vadd.f32 %v454, %v455
        %v457 = vsel %vm342, %v438, 0.0
        %v458 = vadd.f32 %v456, %v457
        %v459 = vsel %vm342, %v439, 0.0
        %v460 = vadd.f32 %v458, %v459
        %v461 = vsel %vm342, %v440, 0.0
        %v462 = vadd.f32 %v460, %v461
        %v463 = vsel %vm342, %v441, 0.0
        %v464 = vadd.f32 %v462, %v463
        %v465 = vsel %vm342, %v442, 0.0
        %v466 = vadd.f32 %v464, %v465
        %v467 = vsel %vm342, %v443, 0.0
        %v468 = vadd.f32 %v466, %v467
        %v469 = vsel %vm342, %v444, 0.0
        %v470 = vadd.f32 %v468, %v469
        %v471 = vsel %vm342, %v445, 0.0
        %v472 = vadd.f32 %v470, %v471
        %v473 = vsel %vm342, %v446, 0.0
        %v474 = vadd.f32 %v472, %v473
        %v475 = vsel %vm342, %v447, 0.0
        %v476 = vadd.f32 %v474, %v475
        %v477 = vsel %vm342, %v448, 0.0
        %v478 = vadd.f32 %v476, %v477
        %v479 = vsel %vm342, %v449, 0.0
        %v480 = vadd.f32 %v478, %v479
        %v481 = vmul.f32 %v480, 0.0625
        %v482 = vmax.f32 %v375, %v481
        %v483 = vsub.f32 %v375, %v482
        %v484 = vmul.f32 %v483, 1.442695
        %v485 = vpow.pop %v484
        %v486 = vsub.f32 %v481, %v482
        %v487 = vmul.f32 %v486, 1.442695
        %v488 = vpow.pop %v487
        %v489 = vmul.f32 %v383, %v485
        %v490 = vadd.f32 %v489, %v488
        %v491 = vmul.f32 %v385, %v485
        %v492 = vadd.f32 %v491, %v488
        %v493 = vrcp.pop %v490
        %v494 = vmul.f32 %v492, %v493
        %495 = vst.msk [vmem:[%s181] sm:$0xf] %vm342, %v494
        %s496 = sand.u32 %s94, 1
        %s497 = scalar_lea.sflag [#allocation3], %s496
        %s498 = sand.u32 %s94, 1
        %s499 = smul.addr %s498, 4
        %s500 = scalar_lea.vmem [#allocation2], %s499
        // Predicated region
        $region29: #{_lambda_.13} parent=27 // pred_check
          %p501 = pneg %p104
        $region30: #{_lambda_.13} parent=27 // pred_check_branch
          %503 = sbr.rel (%p501) target = $region32
        $region31: #{_lambda_.13} parent=27 // pred_region
          %505 = vsyncadd %s497, 0
          %s506 = sadd.s32 %s21, %s20
          %s507 = smul.addr %s506, 4
          %s508 = scalar_lea.hbm %s2, %s507
          %s510 = sshll.u32 %s500, 4
          %s511 = int_to_ptr.vmem [resolvable:$true] %s510
          %s512 = sshll.u32 %s508, 4
          %s513 = int_to_ptr.hbm [resolvable:$true] %s512
          %515 = dma.vmem_to_hbm [thread:$0]  %s511, 64, %s513, %s497
        $region32: #{_lambda_.13} parent=27 // pred_fallthru
          _
      $region28: #{_lambda_.13} parent=5 // pred_fallthru
        _
      %p516 = scmp.le.s32.totalorder 2, %s11
      // Predicated region
      $region33: #{_lambda_.13} parent=5 // pred_check
        %p517 = pneg %p516
      $region34: #{_lambda_.13} parent=5 // pred_check_branch
        %519 = sbr.rel (%p517) target = $region36
      $region35: #{_lambda_.13} parent=5 // pred_region
        %s520 = ssub.s32 %s11, 2
        // Predicated region
        $region37: #{_lambda_.13} parent=35 // pred_check
          %p521 = pneg %p110
        $region38: #{_lambda_.13} parent=35 // pred_check_branch
          %523 = sbr.rel (%p521) target = $region40
        $region39: #{_lambda_.13} parent=35 // pred_region
          %s524 = sand.u32 %s95, 1
          %s525 = scalar_lea.sflag [#allocation3], %s524
          %s526 = sand.u32 %s95, 1
          %s527 = smul.addr %s526, 4
          %s528 = scalar_lea.vmem [#allocation2], %s527
          %530 = dma.done %s525, 64
        $region40: #{_lambda_.13} parent=35 // pred_fallthru
          _
      $region36: #{_lambda_.13} parent=5 // pred_fallthru
        _
    $region6: #{_lambda_.13} parent=1 // loop_footer
      %s15 = sadd.s32 1, %s11
    $region7: #{_lambda_.13} parent=1 // loop_footer_branch
      %10 = sbr.rel target = $region3
    $region8: #{_lambda_.13} parent=1 // loop_exit
      _
    %531 = vsyncpa [#allocation3], 1
    %s532 = scalar_lea.sflag [#allocation3], 1
    %533 = vsyncpa %s532, 1

</llo_original>
